<compile_context>
chip_gen: v7x
topology: tpu7x:2x2x1
jax: 0.10.0
libtpu: 0.0.40
codegen_flags: <defaults>
</compile_context>

<pallas_src>
import functools

import jax
import jax.numpy as jnp
from jax.experimental import pallas as pl
from jax.experimental.pallas import tpu as pltpu


# --------------------- one-time weight / graph transforms -------------------

def _conv1d_same_as_matmul(w, b, T):
    """Conv1d(padding='same') over time as a (Cin*T, Cout*T) matmul.

    w: (Cout, Cin, K), b: (Cout,).  Columns are channel-major flattened
    (index = c*T + t), matching torch's contiguous .view(N, C*T).
    """
    Cout, Cin, K = w.shape
    pad = (K - 1) // 2
    M = jnp.zeros((Cin, T, Cout, T), jnp.float32)
    for k in range(K):
        off = k - pad
        # S[s, t] = 1  iff  s == t + off  (zero padding at the boundaries)
        S = jnp.eye(T, T, k=-off, dtype=jnp.float32)
        M = M + jnp.einsum("oc,st->csot", w[:, :, k].astype(jnp.float32), S)
    return M.reshape(Cin * T, Cout * T), jnp.repeat(b.astype(jnp.float32), T)


def gcn_propagation_matrix(edge_index, num_nodes):
    """Dense D^-1/2 (A + I) D^-1/2 (PyG GCNConv default normalization)."""
    src = edge_index[0]
    dst = edge_index[1]
    w = jnp.ones(src.shape, jnp.float32)
    deg = jnp.zeros((num_nodes,), jnp.float32).at[dst].add(w) + 1.0  # + self loop
    dinv = jax.lax.rsqrt(deg)
    a = jnp.zeros((num_nodes, num_nodes), jnp.float32)
    a = a.at[dst, src].add(dinv[dst] * w * dinv[src])
    a = a + jnp.diag(dinv * dinv)  # self-loop edges
    return a


def prepare_sandwich_layer_gcn(params, edge_index, num_nodes, n_sequences):
    """Build all per-graph / per-parameter constants ONCE (hoisted out of the
    per-forward call).  Matmul operands are cast to bf16 here."""
    T = n_sequences
    Cout = params["rp_w"].shape[0]
    CoutT = Cout * T

    a_hat = gcn_propagation_matrix(edge_index, num_nodes).astype(jnp.bfloat16)

    m_rp, b_rp = _conv1d_same_as_matmul(params["rp_w"], params["rp_b"], T)
    g1 = [_conv1d_same_as_matmul(params["g1_w"][i], params["g1_b"][i], T)
          for i in range(3)]
    g2 = [_conv1d_same_as_matmul(params["g2_w"][i], params["g2_b"][i], T)
          for i in range(3)]

    # fused [residual | conv1 | conv2 | conv3] weight slab -> one wide matmul
    w1 = jnp.concatenate([m_rp] + [m for m, _ in g1], axis=1).astype(jnp.bfloat16)
    b1 = jnp.concatenate([b_rp] + [b for _, b in g1]).reshape(1, 4 * CoutT)
    # fused gated_conv2 weight slab
    w2 = jnp.concatenate([m for m, _ in g2], axis=1).astype(jnp.bfloat16)
    b2 = jnp.concatenate([b for _, b in g2]).reshape(1, 3 * CoutT)

    # block-diagonal group-sum matrix for per-channel (over time) BN stats
    gsum = jnp.kron(jnp.eye(Cout, dtype=jnp.float32),
                    jnp.ones((T, T), jnp.float32))

    gamma = jnp.stack([jnp.repeat(params["bn0_g"], T), params["bn1_g"],
                       jnp.repeat(params["bn2_g"], T)]).astype(jnp.float32)
    beta = jnp.stack([jnp.repeat(params["bn0_b"], T), params["bn1_b"],
                      jnp.repeat(params["bn2_b"], T)]).astype(jnp.float32)

    return {
        "a_hat": a_hat,
        "w1": w1, "b1": b1,
        "gcn_w": params["gcn_w"].astype(jnp.bfloat16),
        "gcn_b": params["gcn_b"].reshape(1, CoutT).astype(jnp.float32),
        "w2": w2, "b2": b2,
        "gsum": gsum, "gamma": gamma, "beta": beta,
    }


# --------------------------------- kernel -----------------------------------

def _sandwich_kernel(x_ref, a_ref, w1_ref, b1_ref, wgcn_ref, bgcn_ref,
                     w2_ref, b2_ref, gsum_ref, gamma_ref, beta_ref, o_ref,
                     *, act, last, eps, inv_n, inv_nt, cout_t):
    f32 = jnp.float32
    bf16 = jnp.bfloat16

    def channel_bn(h, gamma_row, beta_row):
        # BatchNorm1d over (N, C, T): per-channel stats over N*T, broadcast
        # back across T via the block-diagonal group-sum matmul (stays 2-D,
        # lane-dense, no in-kernel reshapes).  Centered two-pass variance.
        s1 = jnp.sum(h, axis=0, keepdims=True)
        mean = jnp.dot(s1, gsum_ref[...], preferred_element_type=f32) * inv_nt
        d = h - mean
        s2 = jnp.sum(d * d, axis=0, keepdims=True)
        var = jnp.dot(s2, gsum_ref[...], preferred_element_type=f32) * inv_nt
        return d * jax.lax.rsqrt(var + eps) * gamma_row + beta_row

    def feature_bn(h, gamma_row, beta_row):
        # BatchNorm1d over (N, F): per-feature stats over the node axis.
        mean = jnp.sum(h, axis=0, keepdims=True) * inv_n
        d = h - mean
        var = jnp.sum(d * d, axis=0, keepdims=True) * inv_n
        return d * jax.lax.rsqrt(var + eps) * gamma_row + beta_row

    x = x_ref[...]                                   # (N, Cin*T) bf16

    # One wide MXU pass: [residual | P | Q | R] = x @ [W_rp | W_c1 | W_c2 | W_c3]
    f1 = jnp.dot(x, w1_ref[...], preferred_element_type=f32) + b1_ref[...]
    residual = f1[:, 0:cout_t]
    h = jnp.maximum(
        f1[:, cout_t:2 * cout_t]
        * jax.nn.sigmoid(f1[:, 2 * cout_t:3 * cout_t])
        + f1[:, 3 * cout_t:4 * cout_t], 0.0)

    # batch_norm (per out-channel, stats over nodes*time)
    h = channel_bn(h, gamma_ref[0:1], beta_ref[0:1])

    # GCNConv: A_hat @ (h @ W) + b   (bf16 operands, f32 accumulation)
    hw = jnp.dot(h.astype(bf16), wgcn_ref[...], preferred_element_type=f32)
    h = jnp.dot(a_ref[...], hw.astype(bf16), preferred_element_type=f32) + bgcn_ref[...]

    # batch_norm_1 (per flattened feature, stats over nodes)
    h = feature_bn(h, gamma_ref[1:2], beta_ref[1:2])

    # gated_conv2 as one wide MXU pass: [P2 | Q2 | R2]
    f2 = jnp.dot(h.astype(bf16), w2_ref[...], preferred_element_type=f32) + b2_ref[...]
    h = jnp.maximum(
        f2[:, 0:cout_t]
        * jax.nn.sigmoid(f2[:, cout_t:2 * cout_t])
        + f2[:, 2 * cout_t:3 * cout_t], 0.0)

    # batch_norm_2 (per out-channel)
    h = channel_bn(h, gamma_ref[2:3], beta_ref[2:3])

    # residual add + activation (only when not last); dropout = 0 -> Identity
    h = h + residual
    if not last:
        if act == "relu":
            h = jnp.maximum(h, 0.0)
        elif act == "gelu":
            h = jax.nn.gelu(h)
        elif act == "silu":
            h = h * jax.nn.sigmoid(h)
    o_ref[...] = h


# ------------------------------- wrapper -------------------------------------

def _full_spec(shape):
    nd = len(shape)
    return pl.BlockSpec(shape, lambda i, _nd=nd: (0,) * _nd)


def _vmem_limit_bytes(io_bytes):
    # Generation-aware budget: double-buffered IO + intermediates, clamped to
    # the physical VMEM capacity minus headroom (64 MiB on v7x, 128 on v5e/v6e).
    try:
        cap = int(pltpu.get_tpu_info().vmem_capacity_bytes)
    except Exception:
        cap = 64 * 1024 * 1024  # conservative v7x floor
    want = max(2 * io_bytes + (16 << 20), 32 << 20)
    return int(min(want, cap - (8 << 20)))


@functools.partial(jax.jit, static_argnames=("act_func", "last", "eps"))
def sandwich_layer_gcn_forward(prepared, X, *, act_func="relu", last=False,
                               eps=1e-5):
    N, Cin, T = X.shape
    CinT = Cin * T
    CoutT = prepared["gcn_w"].shape[1]
    Cout = CoutT // T

    # channel-major flatten (index = c*T + t) == torch .view(N, C*T); bf16 DMA
    x_flat = X.reshape(N, CinT).astype(jnp.bfloat16)

    operands = (x_flat, prepared["a_hat"], prepared["w1"], prepared["b1"],
                prepared["gcn_w"], prepared["gcn_b"], prepared["w2"],
                prepared["b2"], prepared["gsum"], prepared["gamma"],
                prepared["beta"])
    io_bytes = sum(int(a.size) * a.dtype.itemsize for a in operands) + N * CoutT * 4

    kernel = functools.partial(_sandwich_kernel, act=act_func, last=last,
                               eps=eps, inv_n=1.0 / N, inv_nt=1.0 / (N * T),
                               cout_t=CoutT)

    out_flat = pl.pallas_call(
        kernel,
        out_shape=jax.ShapeDtypeStruct((N, CoutT), jnp.float32),
        grid=(1,),
        in_specs=[_full_spec(op.shape) for op in operands],
        out_specs=_full_spec((N, CoutT)),
        compiler_params=pltpu.CompilerParams(
            dimension_semantics=("arbitrary",),
            vmem_limit_bytes=_vmem_limit_bytes(io_bytes),
        ),
    )(*operands)

    # back to (N, out_channels, n_sequences) as in the PyTorch module
    return out_flat.reshape(N, Cout, T)


# ----------------------- pure-JAX f32 reference (unfused) -------------------

def _reference_forward(params, X, edge_index, *, act_func, last, eps=1e-5):
    N, Cin, T = X.shape
    Cout = params["rp_w"].shape[0]
    x = X.reshape(N, Cin * T).astype(jnp.float32)
    a_hat = gcn_propagation_matrix(edge_index, N)

    m_rp, b_rp = _conv1d_same_as_matmul(params["rp_w"], params["rp_b"], T)
    g1 = [_conv1d_same_as_matmul(params["g1_w"][i], params["g1_b"][i], T)
          for i in range(3)]
    g2 = [_conv1d_same_as_matmul(params["g2_w"][i], params["g2_b"][i], T)
          for i in range(3)]

    def channel_bn(h, g, b):
        hc = h.reshape(N, Cout, T)
        mean = hc.mean(axis=(0, 2), keepdims=True)
        var = ((hc - mean) ** 2).mean(axis=(0, 2), keepdims=True)
        hn = (hc - mean) * jax.lax.rsqrt(var + eps) * g[None, :, None] + b[None, :, None]
        return hn.reshape(N, Cout * T)

    def feature_bn(h, g, b):
        mean = h.mean(axis=0, keepdims=True)
        var = ((h - mean) ** 2).mean(axis=0, keepdims=True)
        return (h - mean) * jax.lax.rsqrt(var + eps) * g[None, :] + b[None, :]

    residual = x @ m_rp + b_rp
    h = jnp.maximum((x @ g1[0][0] + g1[0][1])
                    * jax.nn.sigmoid(x @ g1[1][0] + g1[1][1])
                    + (x @ g1[2][0] + g1[2][1]), 0.0)
    h = channel_bn(h, params["bn0_g"], params["bn0_b"])
    h = a_hat @ (h @ params["gcn_w"]) + params["gcn_b"][None, :]
    h = feature_bn(h, params["bn1_g"], params["bn1_b"])
    h = jnp.maximum((h @ g2[0][0] + g2[0][1])
                    * jax.nn.sigmoid(h @ g2[1][0] + g2[1][1])
                    + (h @ g2[2][0] + g2[2][1]), 0.0)
    h = channel_bn(h, params["bn2_g"], params["bn2_b"])
    h = h + residual
    if not last:
        if act_func == "relu":
            h = jnp.maximum(h, 0.0)
        elif act_func == "gelu":
            h = jax.nn.gelu(h)
        elif act_func == "silu":
            h = h * jax.nn.sigmoid(h)
    return h.reshape(N, Cout, T)


# --------------------------------- params ------------------------------------

def init_params(key, in_channels, out_channels, n_sequences):
    keys = iter(jax.random.split(key, 32))

    def rnd(shape, scale=0.2):
        return scale * jax.random.normal(next(keys), shape, dtype=jnp.float32)

    ct = out_channels * n_sequences
    return {
        "rp_w": rnd((out_channels, in_channels, 1)),
        "rp_b": rnd((out_channels,)),
        "g1_w": rnd((3, out_channels, in_channels, 3)),
        "g1_b": rnd((3, out_channels)),
        "gcn_w": rnd((ct, ct), scale=0.1),
        "gcn_b": rnd((ct,)),
        "g2_w": rnd((3, out_channels, out_channels, 3)),
        "g2_b": rnd((3, out_channels)),
        "bn0_g": 1.0 + rnd((out_channels,), 0.02),
        "bn0_b": rnd((out_channels,), 0.02),
        "bn1_g": 1.0 + rnd((ct,), 0.02),
        "bn1_b": rnd((ct,), 0.02),
        "bn2_g": 1.0 + rnd((out_channels,), 0.02),
        "bn2_b": rnd((out_channels,), 0.02),
    }


if __name__ == "__main__":
    # small, lane-dense demo shapes: C*T = 128, N = 64 nodes
    N = 64
    in_channels = 16
    out_channels = 16
    n_sequences = 8

    key = jax.random.PRNGKey(0)
    kx, kp = jax.random.split(key)

    X = jax.random.normal(kx, (N, in_channels, n_sequences), dtype=jnp.float32)

    # bidirectional ring graph: every node has incoming edges
    src = list(range(N)) + [(i + 1) % N for i in range(N)]
    dst = [(i + 1) % N for i in range(N)] + list(range(N))
    edge_index = jnp.array([src, dst], dtype=jnp.int32)   # [2, 2N]

    params = init_params(kp, in_channels, out_channels, n_sequences)

    # graph/weight transforms built once (not per forward call)
    prepared = prepare_sandwich_layer_gcn(params, edge_index, N, n_sequences)

    out = sandwich_layer_gcn_forward(prepared, X, act_func="relu", last=False)
    out = jax.block_until_ready(out)

    assert out.shape == (N, out_channels, n_sequences)
    assert bool(jnp.all(jnp.isfinite(out)))

    # loose check vs. an unfused f32 reference (kernel uses bf16 matmuls)
    ref = _reference_forward(params, X, edge_index, act_func="relu", last=False)
    max_err = float(jnp.max(jnp.abs(out - ref)))
    assert max_err < 0.2, f"kernel/reference mismatch: max abs err = {max_err}"

    print("KERNEL_OK")
</pallas_src>

<mosaic_0001>
module attributes {stable_mosaic.version = 11 : i64} {
  func.func @_sandwich_kernel(%arg0: i32, %arg1: memref<64x128xbf16, #tpu.memory_space<vmem>>, %arg2: memref<64x64xbf16, #tpu.memory_space<vmem>>, %arg3: memref<128x512xbf16, #tpu.memory_space<vmem>>, %arg4: memref<1x512xf32, #tpu.memory_space<vmem>>, %arg5: memref<128x128xbf16, #tpu.memory_space<vmem>>, %arg6: memref<1x128xf32, #tpu.memory_space<vmem>>, %arg7: memref<128x384xbf16, #tpu.memory_space<vmem>>, %arg8: memref<1x384xf32, #tpu.memory_space<vmem>>, %arg9: memref<128x128xf32, #tpu.memory_space<vmem>>, %arg10: memref<3x128xf32, #tpu.memory_space<vmem>>, %arg11: memref<3x128xf32, #tpu.memory_space<vmem>>, %arg12: memref<64x128xf32, #tpu.memory_space<vmem>>) attributes {dimension_semantics = [#tpu.dimension_semantics<arbitrary>], iteration_bounds = array<i64: 1>, scalar_prefetch = 0 : i64, scratch_operands = 0 : i64, tpu.core_type = #tpu.core_type<tc>, window_params = [{pipeline_mode = #tpu.pipeline_mode<synchronous>, transform_indices = @transform_0, window_bounds = array<i64: 64, 128>}, {pipeline_mode = #tpu.pipeline_mode<synchronous>, transform_indices = @transform_1, window_bounds = array<i64: 64, 64>}, {pipeline_mode = #tpu.pipeline_mode<synchronous>, transform_indices = @transform_2, window_bounds = array<i64: 128, 512>}, {pipeline_mode = #tpu.pipeline_mode<synchronous>, transform_indices = @transform_3, window_bounds = array<i64: 1, 512>}, {pipeline_mode = #tpu.pipeline_mode<synchronous>, transform_indices = @transform_4, window_bounds = array<i64: 128, 128>}, {pipeline_mode = #tpu.pipeline_mode<synchronous>, transform_indices = @transform_5, window_bounds = array<i64: 1, 128>}, {pipeline_mode = #tpu.pipeline_mode<synchronous>, transform_indices = @transform_6, window_bounds = array<i64: 128, 384>}, {pipeline_mode = #tpu.pipeline_mode<synchronous>, transform_indices = @transform_7, window_bounds = array<i64: 1, 384>}, {pipeline_mode = #tpu.pipeline_mode<synchronous>, transform_indices = @transform_8, window_bounds = array<i64: 128, 128>}, {pipeline_mode = #tpu.pipeline_mode<synchronous>, transform_indices = @transform_9, window_bounds = array<i64: 3, 128>}, {pipeline_mode = #tpu.pipeline_mode<synchronous>, transform_indices = @transform_10, window_bounds = array<i64: 3, 128>}, {pipeline_mode = #tpu.pipeline_mode<synchronous>, transform_indices = @transform_11, window_bounds = array<i64: 64, 128>}]} {
    %c0 = arith.constant 0 : index
    %c0_0 = arith.constant 0 : index
    %0 = vector.load %arg1[%c0, %c0_0] : memref<64x128xbf16, #tpu.memory_space<vmem>>, vector<64x128xbf16>
    %c0_1 = arith.constant 0 : index
    %c0_2 = arith.constant 0 : index
    %1 = vector.load %arg3[%c0_1, %c0_2] : memref<128x512xbf16, #tpu.memory_space<vmem>>, vector<128x512xbf16>
    %cst = arith.constant dense<0.000000e+00> : vector<64x512xf32>
    %2 = tpu.matmul %0, %1, %cst {dimension_numbers = #tpu.dot_dimension_numbers<[1], [0], [0], [1], [0, 0, 1, 1], [], []>} : vector<64x128xbf16>, vector<128x512xbf16>, vector<64x512xf32> -> vector<64x512xf32>
    %c0_3 = arith.constant 0 : index
    %c0_4 = arith.constant 0 : index
    %3 = vector.load %arg4[%c0_3, %c0_4] : memref<1x512xf32, #tpu.memory_space<vmem>>, vector<1x512xf32>
    %4 = vector.broadcast %3 : vector<1x512xf32> to vector<64x512xf32>
    %5 = arith.addf %2, %4 : vector<64x512xf32>
    %6 = vector.extract_strided_slice %5 {offsets = [0, 0], sizes = [64, 128], strides = [1, 1]} : vector<64x512xf32> to vector<64x128xf32>
    %7 = vector.extract_strided_slice %5 {offsets = [0, 128], sizes = [64, 128], strides = [1, 1]} : vector<64x512xf32> to vector<64x128xf32>
    %8 = vector.extract_strided_slice %5 {offsets = [0, 256], sizes = [64, 128], strides = [1, 1]} : vector<64x512xf32> to vector<64x128xf32>
    %9 = arith.negf %8 : vector<64x128xf32>
    %10 = math.exp %9 : vector<64x128xf32>
    %cst_5 = arith.constant 1.000000e+00 : f32
    %11 = vector.broadcast %cst_5 : f32 to vector<64x128xf32>
    %12 = arith.addf %11, %10 : vector<64x128xf32>
    %13 = arith.divf %11, %12 : vector<64x128xf32>
    %14 = arith.mulf %7, %13 : vector<64x128xf32>
    %15 = vector.extract_strided_slice %5 {offsets = [0, 384], sizes = [64, 128], strides = [1, 1]} : vector<64x512xf32> to vector<64x128xf32>
    %16 = arith.addf %14, %15 : vector<64x128xf32>
    %cst_6 = arith.constant 0.000000e+00 : f32
    %17 = vector.broadcast %cst_6 : f32 to vector<64x128xf32>
    %18 = arith.maximumf %16, %17 : vector<64x128xf32>
    %c0_7 = arith.constant 0 : index
    %c0_8 = arith.constant 0 : index
    %19 = vector.load %arg10[%c0_7, %c0_8] : memref<3x128xf32, #tpu.memory_space<vmem>>, vector<1x128xf32>
    %c0_9 = arith.constant 0 : index
    %c0_10 = arith.constant 0 : index
    %20 = vector.load %arg11[%c0_9, %c0_10] : memref<3x128xf32, #tpu.memory_space<vmem>>, vector<1x128xf32>
    %cst_11 = arith.constant dense<0.000000e+00> : vector<128xf32>
    %21 = vector.multi_reduction <add>, %18, %cst_11 [0] : vector<64x128xf32> to vector<128xf32>
    %22 = vector.shape_cast %21 : vector<128xf32> to vector<1x128xf32>
    %c0_12 = arith.constant 0 : index
    %c0_13 = arith.constant 0 : index
    %23 = vector.load %arg9[%c0_12, %c0_13] : memref<128x128xf32, #tpu.memory_space<vmem>>, vector<128x128xf32>
    %cst_14 = arith.constant dense<0.000000e+00> : vector<1x128xf32>
    %24 = tpu.matmul %22, %23, %cst_14 {dimension_numbers = #tpu.dot_dimension_numbers<[1], [0], [0], [1], [0, 0, 1, 1], [], []>} : vector<1x128xf32>, vector<128x128xf32>, vector<1x128xf32> -> vector<1x128xf32>
    %cst_15 = arith.constant 0.001953125 : f32
    %25 = vector.broadcast %cst_15 : f32 to vector<1x128xf32>
    %26 = arith.mulf %24, %25 : vector<1x128xf32>
    %27 = vector.broadcast %26 : vector<1x128xf32> to vector<64x128xf32>
    %28 = arith.subf %18, %27 : vector<64x128xf32>
    %29 = arith.mulf %28, %28 : vector<64x128xf32>
    %cst_16 = arith.constant dense<0.000000e+00> : vector<128xf32>
    %30 = vector.multi_reduction <add>, %29, %cst_16 [0] : vector<64x128xf32> to vector<128xf32>
    %31 = vector.shape_cast %30 : vector<128xf32> to vector<1x128xf32>
    %c0_17 = arith.constant 0 : index
    %c0_18 = arith.constant 0 : index
    %32 = vector.load %arg9[%c0_17, %c0_18] : memref<128x128xf32, #tpu.memory_space<vmem>>, vector<128x128xf32>
    %cst_19 = arith.constant dense<0.000000e+00> : vector<1x128xf32>
    %33 = tpu.matmul %31, %32, %cst_19 {dimension_numbers = #tpu.dot_dimension_numbers<[1], [0], [0], [1], [0, 0, 1, 1], [], []>} : vector<1x128xf32>, vector<128x128xf32>, vector<1x128xf32> -> vector<1x128xf32>
    %cst_20 = arith.constant 0.001953125 : f32
    %34 = vector.broadcast %cst_20 : f32 to vector<1x128xf32>
    %35 = arith.mulf %33, %34 : vector<1x128xf32>
    %cst_21 = arith.constant 9.99999974E-6 : f32
    %36 = vector.broadcast %cst_21 : f32 to vector<1x128xf32>
    %37 = arith.addf %35, %36 : vector<1x128xf32>
    %38 = math.rsqrt %37 : vector<1x128xf32>
    %39 = vector.broadcast %38 : vector<1x128xf32> to vector<64x128xf32>
    %40 = arith.mulf %28, %39 : vector<64x128xf32>
    %41 = vector.broadcast %19 : vector<1x128xf32> to vector<64x128xf32>
    %42 = arith.mulf %40, %41 : vector<64x128xf32>
    %43 = vector.broadcast %20 : vector<1x128xf32> to vector<64x128xf32>
    %44 = arith.addf %42, %43 : vector<64x128xf32>
    %45 = arith.truncf %44 : vector<64x128xf32> to vector<64x128xbf16>
    %c0_22 = arith.constant 0 : index
    %c0_23 = arith.constant 0 : index
    %46 = vector.load %arg5[%c0_22, %c0_23] : memref<128x128xbf16, #tpu.memory_space<vmem>>, vector<128x128xbf16>
    %cst_24 = arith.constant dense<0.000000e+00> : vector<64x128xf32>
    %47 = tpu.matmul %45, %46, %cst_24 {dimension_numbers = #tpu.dot_dimension_numbers<[1], [0], [0], [1], [0, 0, 1, 1], [], []>} : vector<64x128xbf16>, vector<128x128xbf16>, vector<64x128xf32> -> vector<64x128xf32>
    %c0_25 = arith.constant 0 : index
    %c0_26 = arith.constant 0 : index
    %48 = vector.load %arg2[%c0_25, %c0_26] : memref<64x64xbf16, #tpu.memory_space<vmem>>, vector<64x64xbf16>
    %49 = arith.truncf %47 : vector<64x128xf32> to vector<64x128xbf16>
    %cst_27 = arith.constant dense<0.000000e+00> : vector<64x128xf32>
    %50 = tpu.matmul %48, %49, %cst_27 {dimension_numbers = #tpu.dot_dimension_numbers<[1], [0], [0], [1], [0, 0, 1, 1], [], []>} : vector<64x64xbf16>, vector<64x128xbf16>, vector<64x128xf32> -> vector<64x128xf32>
    %c0_28 = arith.constant 0 : index
    %c0_29 = arith.constant 0 : index
    %51 = vector.load %arg6[%c0_28, %c0_29] : memref<1x128xf32, #tpu.memory_space<vmem>>, vector<1x128xf32>
    %52 = vector.broadcast %51 : vector<1x128xf32> to vector<64x128xf32>
    %53 = arith.addf %50, %52 : vector<64x128xf32>
    %c1 = arith.constant 1 : index
    %c0_30 = arith.constant 0 : index
    %54 = vector.load %arg10[%c1, %c0_30] : memref<3x128xf32, #tpu.memory_space<vmem>>, vector<1x128xf32>
    %c1_31 = arith.constant 1 : index
    %c0_32 = arith.constant 0 : index
    %55 = vector.load %arg11[%c1_31, %c0_32] : memref<3x128xf32, #tpu.memory_space<vmem>>, vector<1x128xf32>
    %cst_33 = arith.constant dense<0.000000e+00> : vector<128xf32>
    %56 = vector.multi_reduction <add>, %53, %cst_33 [0] : vector<64x128xf32> to vector<128xf32>
    %57 = vector.shape_cast %56 : vector<128xf32> to vector<1x128xf32>
    %cst_34 = arith.constant 1.562500e-02 : f32
    %58 = vector.broadcast %cst_34 : f32 to vector<1x128xf32>
    %59 = arith.mulf %57, %58 : vector<1x128xf32>
    %60 = vector.broadcast %59 : vector<1x128xf32> to vector<64x128xf32>
    %61 = arith.subf %53, %60 : vector<64x128xf32>
    %62 = arith.mulf %61, %61 : vector<64x128xf32>
    %cst_35 = arith.constant dense<0.000000e+00> : vector<128xf32>
    %63 = vector.multi_reduction <add>, %62, %cst_35 [0] : vector<64x128xf32> to vector<128xf32>
    %64 = vector.shape_cast %63 : vector<128xf32> to vector<1x128xf32>
    %cst_36 = arith.constant 1.562500e-02 : f32
    %65 = vector.broadcast %cst_36 : f32 to vector<1x128xf32>
    %66 = arith.mulf %64, %65 : vector<1x128xf32>
    %cst_37 = arith.constant 9.99999974E-6 : f32
    %67 = vector.broadcast %cst_37 : f32 to vector<1x128xf32>
    %68 = arith.addf %66, %67 : vector<1x128xf32>
    %69 = math.rsqrt %68 : vector<1x128xf32>
    %70 = vector.broadcast %69 : vector<1x128xf32> to vector<64x128xf32>
    %71 = arith.mulf %61, %70 : vector<64x128xf32>
    %72 = vector.broadcast %54 : vector<1x128xf32> to vector<64x128xf32>
    %73 = arith.mulf %71, %72 : vector<64x128xf32>
    %74 = vector.broadcast %55 : vector<1x128xf32> to vector<64x128xf32>
    %75 = arith.addf %73, %74 : vector<64x128xf32>
    %76 = arith.truncf %75 : vector<64x128xf32> to vector<64x128xbf16>
    %c0_38 = arith.constant 0 : index
    %c0_39 = arith.constant 0 : index
    %77 = vector.load %arg7[%c0_38, %c0_39] : memref<128x384xbf16, #tpu.memory_space<vmem>>, vector<128x384xbf16>
    %cst_40 = arith.constant dense<0.000000e+00> : vector<64x384xf32>
    %78 = tpu.matmul %76, %77, %cst_40 {dimension_numbers = #tpu.dot_dimension_numbers<[1], [0], [0], [1], [0, 0, 1, 1], [], []>} : vector<64x128xbf16>, vector<128x384xbf16>, vector<64x384xf32> -> vector<64x384xf32>
    %c0_41 = arith.constant 0 : index
    %c0_42 = arith.constant 0 : index
    %79 = vector.load %arg8[%c0_41, %c0_42] : memref<1x384xf32, #tpu.memory_space<vmem>>, vector<1x384xf32>
    %80 = vector.broadcast %79 : vector<1x384xf32> to vector<64x384xf32>
    %81 = arith.addf %78, %80 : vector<64x384xf32>
    %82 = vector.extract_strided_slice %81 {offsets = [0, 0], sizes = [64, 128], strides = [1, 1]} : vector<64x384xf32> to vector<64x128xf32>
    %83 = vector.extract_strided_slice %81 {offsets = [0, 128], sizes = [64, 128], strides = [1, 1]} : vector<64x384xf32> to vector<64x128xf32>
    %84 = arith.negf %83 : vector<64x128xf32>
    %85 = math.exp %84 : vector<64x128xf32>
    %cst_43 = arith.constant 1.000000e+00 : f32
    %86 = vector.broadcast %cst_43 : f32 to vector<64x128xf32>
    %87 = arith.addf %86, %85 : vector<64x128xf32>
    %88 = arith.divf %86, %87 : vector<64x128xf32>
    %89 = arith.mulf %82, %88 : vector<64x128xf32>
    %90 = vector.extract_strided_slice %81 {offsets = [0, 256], sizes = [64, 128], strides = [1, 1]} : vector<64x384xf32> to vector<64x128xf32>
    %91 = arith.addf %89, %90 : vector<64x128xf32>
    %cst_44 = arith.constant 0.000000e+00 : f32
    %92 = vector.broadcast %cst_44 : f32 to vector<64x128xf32>
    %93 = arith.maximumf %91, %92 : vector<64x128xf32>
    %c2 = arith.constant 2 : index
    %c0_45 = arith.constant 0 : index
    %94 = vector.load %arg10[%c2, %c0_45] : memref<3x128xf32, #tpu.memory_space<vmem>>, vector<1x128xf32>
    %c2_46 = arith.constant 2 : index
    %c0_47 = arith.constant 0 : index
    %95 = vector.load %arg11[%c2_46, %c0_47] : memref<3x128xf32, #tpu.memory_space<vmem>>, vector<1x128xf32>
    %cst_48 = arith.constant dense<0.000000e+00> : vector<128xf32>
    %96 = vector.multi_reduction <add>, %93, %cst_48 [0] : vector<64x128xf32> to vector<128xf32>
    %97 = vector.shape_cast %96 : vector<128xf32> to vector<1x128xf32>
    %c0_49 = arith.constant 0 : index
    %c0_50 = arith.constant 0 : index
    %98 = vector.load %arg9[%c0_49, %c0_50] : memref<128x128xf32, #tpu.memory_space<vmem>>, vector<128x128xf32>
    %cst_51 = arith.constant dense<0.000000e+00> : vector<1x128xf32>
    %99 = tpu.matmul %97, %98, %cst_51 {dimension_numbers = #tpu.dot_dimension_numbers<[1], [0], [0], [1], [0, 0, 1, 1], [], []>} : vector<1x128xf32>, vector<128x128xf32>, vector<1x128xf32> -> vector<1x128xf32>
    %cst_52 = arith.constant 0.001953125 : f32
    %100 = vector.broadcast %cst_52 : f32 to vector<1x128xf32>
    %101 = arith.mulf %99, %100 : vector<1x128xf32>
    %102 = vector.broadcast %101 : vector<1x128xf32> to vector<64x128xf32>
    %103 = arith.subf %93, %102 : vector<64x128xf32>
    %104 = arith.mulf %103, %103 : vector<64x128xf32>
    %cst_53 = arith.constant dense<0.000000e+00> : vector<128xf32>
    %105 = vector.multi_reduction <add>, %104, %cst_53 [0] : vector<64x128xf32> to vector<128xf32>
    %106 = vector.shape_cast %105 : vector<128xf32> to vector<1x128xf32>
    %c0_54 = arith.constant 0 : index
    %c0_55 = arith.constant 0 : index
    %107 = vector.load %arg9[%c0_54, %c0_55] : memref<128x128xf32, #tpu.memory_space<vmem>>, vector<128x128xf32>
    %cst_56 = arith.constant dense<0.000000e+00> : vector<1x128xf32>
    %108 = tpu.matmul %106, %107, %cst_56 {dimension_numbers = #tpu.dot_dimension_numbers<[1], [0], [0], [1], [0, 0, 1, 1], [], []>} : vector<1x128xf32>, vector<128x128xf32>, vector<1x128xf32> -> vector<1x128xf32>
    %cst_57 = arith.constant 0.001953125 : f32
    %109 = vector.broadcast %cst_57 : f32 to vector<1x128xf32>
    %110 = arith.mulf %108, %109 : vector<1x128xf32>
    %cst_58 = arith.constant 9.99999974E-6 : f32
    %111 = vector.broadcast %cst_58 : f32 to vector<1x128xf32>
    %112 = arith.addf %110, %111 : vector<1x128xf32>
    %113 = math.rsqrt %112 : vector<1x128xf32>
    %114 = vector.broadcast %113 : vector<1x128xf32> to vector<64x128xf32>
    %115 = arith.mulf %103, %114 : vector<64x128xf32>
    %116 = vector.broadcast %94 : vector<1x128xf32> to vector<64x128xf32>
    %117 = arith.mulf %115, %116 : vector<64x128xf32>
    %118 = vector.broadcast %95 : vector<1x128xf32> to vector<64x128xf32>
    %119 = arith.addf %117, %118 : vector<64x128xf32>
    %120 = arith.addf %119, %6 : vector<64x128xf32>
    %cst_59 = arith.constant 0.000000e+00 : f32
    %121 = vector.broadcast %cst_59 : f32 to vector<64x128xf32>
    %122 = arith.maximumf %120, %121 : vector<64x128xf32>
    %c0_60 = arith.constant 0 : index
    %c0_61 = arith.constant 0 : index
    %123 = vector.load %arg12[%c0_60, %c0_61] : memref<64x128xf32, #tpu.memory_space<vmem>>, vector<64x128xf32>
    tpu.vector_store %arg12[%c0_60, %c0_61], %122 {strides = array<i32>} : memref<64x128xf32, #tpu.memory_space<vmem>>, vector<64x128xf32>,
    return
  }
  func.func @transform_0(%arg0: i32) -> (i32, i32) {
    %c0_i32 = arith.constant 0 : i32
    %c0_i32_0 = arith.constant 0 : i32
    %c0_i32_1 = arith.constant 0 : i32
    return %c0_i32, %c0_i32_0 : i32, i32
  }
  func.func @transform_1(%arg0: i32) -> (i32, i32) {
    %c0_i32 = arith.constant 0 : i32
    %c0_i32_0 = arith.constant 0 : i32
    %c0_i32_1 = arith.constant 0 : i32
    return %c0_i32, %c0_i32_0 : i32, i32
  }
  func.func @transform_2(%arg0: i32) -> (i32, i32) {
    %c0_i32 = arith.constant 0 : i32
    %c0_i32_0 = arith.constant 0 : i32
    %c0_i32_1 = arith.constant 0 : i32
    return %c0_i32, %c0_i32_0 : i32, i32
  }
  func.func @transform_3(%arg0: i32) -> (i32, i32) {
    %c0_i32 = arith.constant 0 : i32
    %c0_i32_0 = arith.constant 0 : i32
    %c0_i32_1 = arith.constant 0 : i32
    return %c0_i32, %c0_i32_0 : i32, i32
  }
  func.func @transform_4(%arg0: i32) -> (i32, i32) {
    %c0_i32 = arith.constant 0 : i32
    %c0_i32_0 = arith.constant 0 : i32
    %c0_i32_1 = arith.constant 0 : i32
    return %c0_i32, %c0_i32_0 : i32, i32
  }
  func.func @transform_5(%arg0: i32) -> (i32, i32) {
    %c0_i32 = arith.constant 0 : i32
    %c0_i32_0 = arith.constant 0 : i32
    %c0_i32_1 = arith.constant 0 : i32
    return %c0_i32, %c0_i32_0 : i32, i32
  }
  func.func @transform_6(%arg0: i32) -> (i32, i32) {
    %c0_i32 = arith.constant 0 : i32
    %c0_i32_0 = arith.constant 0 : i32
    %c0_i32_1 = arith.constant 0 : i32
    return %c0_i32, %c0_i32_0 : i32, i32
  }
  func.func @transform_7(%arg0: i32) -> (i32, i32) {
    %c0_i32 = arith.constant 0 : i32
    %c0_i32_0 = arith.constant 0 : i32
    %c0_i32_1 = arith.constant 0 : i32
    return %c0_i32, %c0_i32_0 : i32, i32
  }
  func.func @transform_8(%arg0: i32) -> (i32, i32) {
    %c0_i32 = arith.constant 0 : i32
    %c0_i32_0 = arith.constant 0 : i32
    %c0_i32_1 = arith.constant 0 : i32
    return %c0_i32, %c0_i32_0 : i32, i32
  }
  func.func @transform_9(%arg0: i32) -> (i32, i32) {
    %c0_i32 = arith.constant 0 : i32
    %c0_i32_0 = arith.constant 0 : i32
    %c0_i32_1 = arith.constant 0 : i32
    return %c0_i32, %c0_i32_0 : i32, i32
  }
  func.func @transform_10(%arg0: i32) -> (i32, i32) {
    %c0_i32 = arith.constant 0 : i32
    %c0_i32_0 = arith.constant 0 : i32
    %c0_i32_1 = arith.constant 0 : i32
    return %c0_i32, %c0_i32_0 : i32, i32
  }
  func.func @transform_11(%arg0: i32) -> (i32, i32) {
    %c0_i32 = arith.constant 0 : i32
    %c0_i32_0 = arith.constant 0 : i32
    %c0_i32_1 = arith.constant 0 : i32
    return %c0_i32, %c0_i32_0 : i32, i32
  }
}

</mosaic_0001>

<llo_original>
// kernel: sandwich_layer_gcn_forward.1
$region0: #{sandwich_layer_gcn_forward.1}
  #allocation0 [shape = 'u32[]', space=smem, size = 0x4, offset = 0x4, fixed_abs, tag = 'smem constant byte address 0x4 - core index']
  #allocation1 [shape = 'u32[144,128]{1,0:T(1,128)}', space=vmem, size = 0x12000, scoped, tag = 'internal scratch']
  %s0 = inlined_call_operand.vmem [shape: bf16[64,128], index: 0, kind: input, shape index: {}]
  %s1 = inlined_call_operand.vmem [shape: bf16[64,64], index: 1, kind: input, shape index: {}]
  %s2 = inlined_call_operand.vmem [shape: bf16[128,512], index: 2, kind: input, shape index: {}]
  %s3 = inlined_call_operand.vmem [shape: f32[1,512], index: 3, kind: input, shape index: {}]
  %s4 = inlined_call_operand.hbm [shape: bf16[128,128], index: 4, kind: input, shape index: {}]
  %s5 = inlined_call_operand.vmem [shape: f32[1,128], index: 5, kind: input, shape index: {}]
  %s6 = inlined_call_operand.hbm [shape: bf16[128,384], index: 6, kind: input, shape index: {}]
  %s7 = inlined_call_operand.vmem [shape: f32[1,384], index: 7, kind: input, shape index: {}]
  %s8 = inlined_call_operand.hbm [shape: f32[128,128], index: 8, kind: input, shape index: {}]
  %s9 = inlined_call_operand.vmem [shape: f32[3,128], index: 9, kind: input, shape index: {}]
  %s10 = inlined_call_operand.vmem [shape: f32[3,128], index: 10, kind: input, shape index: {}]
  %s11 = inlined_call_operand.vmem [shape: f32[64,128], index: 11, kind: output, shape index: {}]
  %s12 = sld [smem:[#allocation0]]
  $region66: #{sandwich_layer_gcn_forward.1} parent=0
    _
  %s14 = ssub.s32 1, %s12
  %s15 = scalar_select 0, %s14, %s12
  $region1: #{sandwich_layer_gcn_forward.1} parent=0
    #allocation2 [shape = 'u8[32768]{0}', space=vmem, size = 0x8000, scoped, tag = 'input window, operand 4, single buffered']
    #allocation3 [shape = 's32[1]{0}', space=sflag, size = 0x4, scoped, tag = 'scoped memory for sandwich_layer_gcn_forward.1']
    #allocation4 [shape = 'u8[98304]{0}', space=vmem, size = 0x18000, scoped, tag = 'input window, operand 6, single buffered']
    #allocation5 [shape = 's32[1]{0}', space=sflag, size = 0x4, scoped, tag = 'scoped memory for sandwich_layer_gcn_forward.1']
    #allocation6 [shape = 'u8[65536]{0}', space=vmem, size = 0x10000, scoped, tag = 'input window, operand 8, single buffered']
    %16 = vsyncpa [#allocation3], 0
    %17 = vsyncpa [#allocation5], 0
    // Predicated region
    $region2: #{sandwich_layer_gcn_forward.1} parent=1 // pred_check
      _
    $region3: #{sandwich_layer_gcn_forward.1} parent=1 // pred_check_branch
      %19 = sbr.rel (0) target = $region5
    $region4: #{sandwich_layer_gcn_forward.1} parent=1 // pred_region
      _
    $region5: #{sandwich_layer_gcn_forward.1} parent=1 // pred_fallthru
      _
    // Predicated region
    $region6: #{sandwich_layer_gcn_forward.1} parent=1 // pred_check
      _
    $region7: #{sandwich_layer_gcn_forward.1} parent=1 // pred_check_branch
      %21 = sbr.rel (0) target = $region9
    $region8: #{sandwich_layer_gcn_forward.1} parent=1 // pred_region
      _
    $region9: #{sandwich_layer_gcn_forward.1} parent=1 // pred_fallthru
      _
    // Predicated region
    $region10: #{sandwich_layer_gcn_forward.1} parent=1 // pred_check
      _
    $region11: #{sandwich_layer_gcn_forward.1} parent=1 // pred_check_branch
      %23 = sbr.rel (0) target = $region13
    $region12: #{sandwich_layer_gcn_forward.1} parent=1 // pred_region
      _
    $region13: #{sandwich_layer_gcn_forward.1} parent=1 // pred_fallthru
      _
    // Predicated region
    $region14: #{sandwich_layer_gcn_forward.1} parent=1 // pred_check
      _
    $region15: #{sandwich_layer_gcn_forward.1} parent=1 // pred_check_branch
      %25 = sbr.rel (0) target = $region17
    $region16: #{sandwich_layer_gcn_forward.1} parent=1 // pred_region
      _
    $region17: #{sandwich_layer_gcn_forward.1} parent=1 // pred_fallthru
      _
    // Predicated region
    $region18: #{sandwich_layer_gcn_forward.1} parent=1 // pred_check
      _
    $region19: #{sandwich_layer_gcn_forward.1} parent=1 // pred_check_branch
      %27 = sbr.rel (0) target = $region21
    $region20: #{sandwich_layer_gcn_forward.1} parent=1 // pred_region
      %s29 = ssub.s32 1024, 1024
      %30 = vsyncadd [#allocation3], %s29
      %s31 = sshll.u32 [#allocation2], 4
      %s32 = int_to_ptr.vmem [resolvable:$true] %s31
      %37 = dma.hbm_to_vmem [thread:$0]  %s4, 1024, %s32, [#allocation3], 64, 64, 4
    $region21: #{sandwich_layer_gcn_forward.1} parent=1 // pred_fallthru
      _
    // Predicated region
    $region22: #{sandwich_layer_gcn_forward.1} parent=1 // pred_check
      _
    $region23: #{sandwich_layer_gcn_forward.1} parent=1 // pred_check_branch
      %39 = sbr.rel (0) target = $region25
    $region24: #{sandwich_layer_gcn_forward.1} parent=1 // pred_region
      _
    $region25: #{sandwich_layer_gcn_forward.1} parent=1 // pred_fallthru
      _
    // Predicated region
    $region26: #{sandwich_layer_gcn_forward.1} parent=1 // pred_check
      _
    $region27: #{sandwich_layer_gcn_forward.1} parent=1 // pred_check_branch
      %41 = sbr.rel (0) target = $region29
    $region28: #{sandwich_layer_gcn_forward.1} parent=1 // pred_region
      %s43 = ssub.s32 3072, 3072
      %44 = vsyncadd [#allocation5], %s43
      %s45 = sshll.u32 [#allocation4], 4
      %s46 = int_to_ptr.vmem [resolvable:$true] %s45
      %51 = dma.hbm_to_vmem [thread:$0]  %s6, 3072, %s46, [#allocation5], 192, 192, 12
    $region29: #{sandwich_layer_gcn_forward.1} parent=1 // pred_fallthru
      _
    // Predicated region
    $region30: #{sandwich_layer_gcn_forward.1} parent=1 // pred_check
      _
    $region31: #{sandwich_layer_gcn_forward.1} parent=1 // pred_check_branch
      %53 = sbr.rel (0) target = $region33
    $region32: #{sandwich_layer_gcn_forward.1} parent=1 // pred_region
      _
    $region33: #{sandwich_layer_gcn_forward.1} parent=1 // pred_fallthru
      _
    // Predicated region
    $region34: #{sandwich_layer_gcn_forward.1} parent=1 // pred_check
      _
    $region35: #{sandwich_layer_gcn_forward.1} parent=1 // pred_check_branch
      %55 = sbr.rel (0) target = $region37
    $region36: #{sandwich_layer_gcn_forward.1} parent=1 // pred_region
      %s57 = ssub.s32 2048, 2048
      %58 = vsyncadd [#allocation5], %s57
      %s59 = sshll.u32 [#allocation6], 4
      %s60 = int_to_ptr.vmem [resolvable:$true] %s59
      %65 = dma.hbm_to_vmem [thread:$0]  %s8, 2048, %s60, [#allocation5], 128, 128, 8
    $region37: #{sandwich_layer_gcn_forward.1} parent=1 // pred_fallthru
      _
    // Predicated region
    $region38: #{sandwich_layer_gcn_forward.1} parent=1 // pred_check
      _
    $region39: #{sandwich_layer_gcn_forward.1} parent=1 // pred_check_branch
      %67 = sbr.rel (0) target = $region41
    $region40: #{sandwich_layer_gcn_forward.1} parent=1 // pred_region
      _
    $region41: #{sandwich_layer_gcn_forward.1} parent=1 // pred_fallthru
      _
    // Predicated region
    $region42: #{sandwich_layer_gcn_forward.1} parent=1 // pred_check
      _
    $region43: #{sandwich_layer_gcn_forward.1} parent=1 // pred_check_branch
      %69 = sbr.rel (0) target = $region45
    $region44: #{sandwich_layer_gcn_forward.1} parent=1 // pred_region
      _
    $region45: #{sandwich_layer_gcn_forward.1} parent=1 // pred_fallthru
      _
    // Predicated region
    $region46: #{sandwich_layer_gcn_forward.1} parent=1 // pred_check
      _
    $region47: #{sandwich_layer_gcn_forward.1} parent=1 // pred_check_branch
      %71 = sbr.rel (0) target = $region49
    $region48: #{sandwich_layer_gcn_forward.1} parent=1 // pred_region
      %72 = dma.done [#allocation3], 1024
    $region49: #{sandwich_layer_gcn_forward.1} parent=1 // pred_fallthru
      _
    // Predicated region
    $region50: #{sandwich_layer_gcn_forward.1} parent=1 // pred_check
      _
    $region51: #{sandwich_layer_gcn_forward.1} parent=1 // pred_check_branch
      %74 = sbr.rel (0) target = $region53
    $region52: #{sandwich_layer_gcn_forward.1} parent=1 // pred_region
      %75 = dma.done [#allocation5], 3072
    $region53: #{sandwich_layer_gcn_forward.1} parent=1 // pred_fallthru
      _
    // Predicated region
    $region54: #{sandwich_layer_gcn_forward.1} parent=1 // pred_check
      _
    $region55: #{sandwich_layer_gcn_forward.1} parent=1 // pred_check_branch
      %77 = sbr.rel (0) target = $region57
    $region56: #{sandwich_layer_gcn_forward.1} parent=1 // pred_region
      %78 = dma.done [#allocation5], 2048
    $region57: #{sandwich_layer_gcn_forward.1} parent=1 // pred_fallthru
      _
    %v80 = vld [vmem:[%s0] sm:$0xf]
    %v81 = vld [vmem:[%s0 + $0x4] sm:$0xf]
    %v82 = vld [vmem:[%s0 + $0x8] sm:$0xf]
    %v83 = vld [vmem:[%s0 + $0xc] sm:$0xf]
    %v84 = vld [vmem:[%s0 + $0x10] sm:$0xf]
    %v85 = vld [vmem:[%s0 + $0x14] sm:$0xf]
    %v86 = vld [vmem:[%s0 + $0x18] sm:$0xf]
    %v87 = vld [vmem:[%s0 + $0x1c] sm:$0xf]
    %v88 = vld [vmem:[%s2] sm:$0xff]
    %v89 = vld [vmem:[%s2 + $0x8] sm:$0xff]
    %v90 = vld [vmem:[%s2 + $0x10] sm:$0xff]
    %v91 = vld [vmem:[%s2 + $0x18] sm:$0xff]
    %v92 = vld [vmem:[%s2 + $0x20] sm:$0xff]
    %v93 = vld [vmem:[%s2 + $0x28] sm:$0xff]
    %v94 = vld [vmem:[%s2 + $0x30] sm:$0xff]
    %v95 = vld [vmem:[%s2 + $0x38] sm:$0xff]
    %v96 = vld [vmem:[%s2 + $0x40] sm:$0xff]
    %v97 = vld [vmem:[%s2 + $0x48] sm:$0xff]
    %v98 = vld [vmem:[%s2 + $0x50] sm:$0xff]
    %v99 = vld [vmem:[%s2 + $0x58] sm:$0xff]
    %v100 = vld [vmem:[%s2 + $0x60] sm:$0xff]
    %v101 = vld [vmem:[%s2 + $0x68] sm:$0xff]
    %v102 = vld [vmem:[%s2 + $0x70] sm:$0xff]
    %v103 = vld [vmem:[%s2 + $0x78] sm:$0xff]
    %v104 = vld [vmem:[%s2 + $0x80] sm:$0xff]
    %v105 = vld [vmem:[%s2 + $0x88] sm:$0xff]
    %v106 = vld [vmem:[%s2 + $0x90] sm:$0xff]
    %v107 = vld [vmem:[%s2 + $0x98] sm:$0xff]
    %v108 = vld [vmem:[%s2 + $0xa0] sm:$0xff]
    %v109 = vld [vmem:[%s2 + $0xa8] sm:$0xff]
    %v110 = vld [vmem:[%s2 + $0xb0] sm:$0xff]
    %v111 = vld [vmem:[%s2 + $0xb8] sm:$0xff]
    %v112 = vld [vmem:[%s2 + $0xc0] sm:$0xff]
    %v113 = vld [vmem:[%s2 + $0xc8] sm:$0xff]
    %v114 = vld [vmem:[%s2 + $0xd0] sm:$0xff]
    %v115 = vld [vmem:[%s2 + $0xd8] sm:$0xff]
    %v116 = vld [vmem:[%s2 + $0xe0] sm:$0xff]
    %v117 = vld [vmem:[%s2 + $0xe8] sm:$0xff]
    %v118 = vld [vmem:[%s2 + $0xf0] sm:$0xff]
    %v119 = vld [vmem:[%s2 + $0xf8] sm:$0xff]
    %v120 = vld [vmem:[%s3] sm:$0xf]
    %v122 = vlaneseq
    %v123 = vshrl.u32 %v122, 7
    %v124 = vsub.s32 0, %v123
    %v125 = vrot.slane %v120, %v124
    %v126 = vlaneseq
    %v127 = vshrl.u32 %v126, 7
    %v128 = vsub.s32 1, %v127
    %v129 = vrot.slane %v120, %v128
    %v130 = vlaneseq
    %v131 = vshrl.u32 %v130, 7
    %v132 = vsub.s32 2, %v131
    %v133 = vrot.slane %v120, %v132
    %v134 = vlaneseq
    %v135 = vshrl.u32 %v134, 7
    %v136 = vsub.s32 3, %v135
    %v137 = vrot.slane %v120, %v136
    %v150 = vunpack.c.l.b16 %v80
    %v151 = vunpack.c.l.b16 %v81
    %v152 = vunpack.c.l.b16 %v82
    %v153 = vunpack.c.l.b16 %v83
    %v154 = vunpack.c.l.b16 %v84
    %v155 = vunpack.c.l.b16 %v85
    %v156 = vunpack.c.l.b16 %v86
    %v157 = vunpack.c.l.b16 %v87
    %v158 = vpack.c.b16 %v151, %v150
    %v159 = vpack.c.b16 %v153, %v152
    %v160 = vpack.c.b16 %v155, %v154
    %v161 = vpack.c.b16 %v157, %v156
    %v198 = vunpack.c.l.b16 %v88
    %v199 = vunpack.c.h.b16 %v88
    %v200 = vunpack.c.l.b16 %v89
    %v201 = vunpack.c.h.b16 %v89
    %v202 = vunpack.c.l.b16 %v90
    %v203 = vunpack.c.h.b16 %v90
    %v204 = vunpack.c.l.b16 %v91
    %v205 = vunpack.c.h.b16 %v91
    %v206 = vunpack.c.l.b16 %v92
    %v207 = vunpack.c.h.b16 %v92
    %v208 = vunpack.c.l.b16 %v93
    %v209 = vunpack.c.h.b16 %v93
    %v210 = vunpack.c.l.b16 %v94
    %v211 = vunpack.c.h.b16 %v94
    %v212 = vunpack.c.l.b16 %v95
    %v213 = vunpack.c.h.b16 %v95
    %v214 = vunpack.c.l.b16 %v96
    %v215 = vunpack.c.h.b16 %v96
    %v216 = vunpack.c.l.b16 %v97
    %v217 = vunpack.c.h.b16 %v97
    %v218 = vunpack.c.l.b16 %v98
    %v219 = vunpack.c.h.b16 %v98
    %v220 = vunpack.c.l.b16 %v99
    %v221 = vunpack.c.h.b16 %v99
    %v222 = vunpack.c.l.b16 %v100
    %v223 = vunpack.c.h.b16 %v100
    %v224 = vunpack.c.l.b16 %v101
    %v225 = vunpack.c.h.b16 %v101
    %v226 = vunpack.c.l.b16 %v102
    %v227 = vunpack.c.h.b16 %v102
    %v228 = vunpack.c.l.b16 %v103
    %v229 = vunpack.c.h.b16 %v103
    %v230 = vunpack.c.l.b16 %v104
    %v231 = vunpack.c.h.b16 %v104
    %v232 = vunpack.c.l.b16 %v105
    %v233 = vunpack.c.h.b16 %v105
    %v234 = vunpack.c.l.b16 %v106
    %v235 = vunpack.c.h.b16 %v106
    %v236 = vunpack.c.l.b16 %v107
    %v237 = vunpack.c.h.b16 %v107
    %v238 = vunpack.c.l.b16 %v108
    %v239 = vunpack.c.h.b16 %v108
    %v240 = vunpack.c.l.b16 %v109
    %v241 = vunpack.c.h.b16 %v109
    %v242 = vunpack.c.l.b16 %v110
    %v243 = vunpack.c.h.b16 %v110
    %v244 = vunpack.c.l.b16 %v111
    %v245 = vunpack.c.h.b16 %v111
    %v246 = vunpack.c.l.b16 %v112
    %v247 = vunpack.c.h.b16 %v112
    %v248 = vunpack.c.l.b16 %v113
    %v249 = vunpack.c.h.b16 %v113
    %v250 = vunpack.c.l.b16 %v114
    %v251 = vunpack.c.h.b16 %v114
    %v252 = vunpack.c.l.b16 %v115
    %v253 = vunpack.c.h.b16 %v115
    %v254 = vunpack.c.l.b16 %v116
    %v255 = vunpack.c.h.b16 %v116
    %v256 = vunpack.c.l.b16 %v117
    %v257 = vunpack.c.h.b16 %v117
    %v258 = vunpack.c.l.b16 %v118
    %v259 = vunpack.c.h.b16 %v118
    %v260 = vunpack.c.l.b16 %v119
    %v261 = vunpack.c.h.b16 %v119
    %v262 = vpack.c.b16 %v202, %v198
    %v263 = vpack.c.b16 %v203, %v199
    %v264 = vpack.c.b16 %v204, %v200
    %v265 = vpack.c.b16 %v205, %v201
    %v266 = vpack.c.b16 %v210, %v206
    %v267 = vpack.c.b16 %v211, %v207
    %v268 = vpack.c.b16 %v212, %v208
    %v269 = vpack.c.b16 %v213, %v209
    %v270 = vpack.c.b16 %v218, %v214
    %v271 = vpack.c.b16 %v219, %v215
    %v272 = vpack.c.b16 %v220, %v216
    %v273 = vpack.c.b16 %v221, %v217
    %v274 = vpack.c.b16 %v226, %v222
    %v275 = vpack.c.b16 %v227, %v223
    %v276 = vpack.c.b16 %v228, %v224
    %v277 = vpack.c.b16 %v229, %v225
    %v278 = vpack.c.b16 %v234, %v230
    %v279 = vpack.c.b16 %v235, %v231
    %v280 = vpack.c.b16 %v236, %v232
    %v281 = vpack.c.b16 %v237, %v233
    %v282 = vpack.c.b16 %v242, %v238
    %v283 = vpack.c.b16 %v243, %v239
    %v284 = vpack.c.b16 %v244, %v240
    %v285 = vpack.c.b16 %v245, %v241
    %v286 = vpack.c.b16 %v250, %v246
    %v287 = vpack.c.b16 %v251, %v247
    %v288 = vpack.c.b16 %v252, %v248
    %v289 = vpack.c.b16 %v253, %v249
    %v290 = vpack.c.b16 %v258, %v254
    %v291 = vpack.c.b16 %v259, %v255
    %v292 = vpack.c.b16 %v260, %v256
    %v293 = vpack.c.b16 %v261, %v257
    %326 = vmatprep.subr.bf16.mxu0 %v263
    %327 = vmatpush1.bf16.msra.mxu0 %v262
    %328 = vmatprep.subr.bf16.mxu0 %v267
    %329 = vmatpush1.bf16.msra.mxu0 %v266
    %330 = vmatprep.subr.bf16.mxu0 %v271
    %331 = vmatpush1.bf16.msra.mxu0 %v270
    %332 = vmatprep.subr.bf16.mxu0 %v275
    %333 = vmatpush1.bf16.msra.mxu0 %v274
    %334 = vmatprep.subr.bf16.mxu0 %v279
    %335 = vmatpush1.bf16.msra.mxu0 %v278
    %336 = vmatprep.subr.bf16.mxu0 %v283
    %337 = vmatpush1.bf16.msra.mxu0 %v282
    %338 = vmatprep.subr.bf16.mxu0 %v287
    %339 = vmatpush1.bf16.msra.mxu0 %v286
    %340 = vmatprep.subr.bf16.mxu0 %v291
    %341 = vmatpush1.bf16.msra.mxu0 %v290
    %342 = vmatprep.subr.bf16.mxu0 0
    %343 = vmatpush1.bf16.msra.mxu0 0
    %344 = vmatprep.subr.bf16.mxu0 0
    %345 = vmatpush1.bf16.msra.mxu0 0
    %346 = vmatprep.subr.bf16.mxu0 0
    %347 = vmatpush1.bf16.msra.mxu0 0
    %348 = vmatprep.subr.bf16.mxu0 0
    %349 = vmatpush1.bf16.msra.mxu0 0
    %350 = vmatprep.subr.bf16.mxu0 0
    %351 = vmatpush1.bf16.msra.mxu0 0
    %352 = vmatprep.subr.bf16.mxu0 0
    %353 = vmatpush1.bf16.msra.mxu0 0
    %354 = vmatprep.subr.bf16.mxu0 0
    %355 = vmatpush1.bf16.msra.mxu0 0
    %356 = vmatprep.subr.bf16.mxu0 0
    %357 = vmatpush1.bf16.msra.mxu0 0
    %358 = vmatprep.mubr.bf16.mxu0 0
    %359 = vmatmul.mubr.bf16.gmra.mrb[0].mxu0 %v158
    %v360 = vpop.f32.mrb[0].mxu0
    %v361 = vadd.f32 %v125, %v360
    %v362 = vpop.f32.mrb[0].mxu0
    %v363 = vadd.f32 %v129, %v362
    %v364 = vpop.f32.mrb[0].mxu0
    %v365 = vadd.f32 %v125, %v364
    %v366 = vpop.f32.mrb[0].mxu0
    %v367 = vadd.f32 %v129, %v366
    %368 = vmatprep.mubr.bf16.mxu0 0
    %369 = vmatmul.mubr.bf16.gmra.mrb[0].mxu0 %v159
    %v370 = vpop.f32.mrb[0].mxu0
    %v371 = vadd.f32 %v125, %v370
    %v372 = vpop.f32.mrb[0].mxu0
    %v373 = vadd.f32 %v129, %v372
    %v374 = vpop.f32.mrb[0].mxu0
    %v375 = vadd.f32 %v125, %v374
    %v376 = vpop.f32.mrb[0].mxu0
    %v377 = vadd.f32 %v129, %v376
    %378 = vmatprep.mubr.bf16.mxu0 0
    %379 = vmatmul.mubr.bf16.gmra.mrb[0].mxu0 %v160
    %v380 = vpop.f32.mrb[0].mxu0
    %v381 = vadd.f32 %v125, %v380
    %v382 = vpop.f32.mrb[0].mxu0
    %v383 = vadd.f32 %v129, %v382
    %v384 = vpop.f32.mrb[0].mxu0
    %v385 = vadd.f32 %v125, %v384
    %v386 = vpop.f32.mrb[0].mxu0
    %v387 = vadd.f32 %v129, %v386
    %388 = vmatprep.mubr.bf16.mxu0 0
    %389 = vmatmul.mubr.bf16.gmra.mrb[0].mxu0 %v161
    %v390 = vpop.f32.mrb[0].mxu0
    %v391 = vadd.f32 %v125, %v390
    %v392 = vpop.f32.mrb[0].mxu0
    %v393 = vadd.f32 %v129, %v392
    %v394 = vpop.f32.mrb[0].mxu0
    %v395 = vadd.f32 %v125, %v394
    %v396 = vpop.f32.mrb[0].mxu0
    %v397 = vadd.f32 %v129, %v396
    %398 = vdwg.mxu0
    %399 = vmatprep.subr.bf16.mxu0 %v265
    %400 = vmatpush1.bf16.msra.mxu0 %v264
    %401 = vmatprep.subr.bf16.mxu0 %v269
    %402 = vmatpush1.bf16.msra.mxu0 %v268
    %403 = vmatprep.subr.bf16.mxu0 %v273
    %404 = vmatpush1.bf16.msra.mxu0 %v272
    %405 = vmatprep.subr.bf16.mxu0 %v277
    %406 = vmatpush1.bf16.msra.mxu0 %v276
    %407 = vmatprep.subr.bf16.mxu0 %v281
    %408 = vmatpush1.bf16.msra.mxu0 %v280
    %409 = vmatprep.subr.bf16.mxu0 %v285
    %410 = vmatpush1.bf16.msra.mxu0 %v284
    %411 = vmatprep.subr.bf16.mxu0 %v289
    %412 = vmatpush1.bf16.msra.mxu0 %v288
    %413 = vmatprep.subr.bf16.mxu0 %v293
    %414 = vmatpush1.bf16.msra.mxu0 %v292
    %415 = vmatprep.subr.bf16.mxu0 0
    %416 = vmatpush1.bf16.msra.mxu0 0
    %417 = vmatprep.subr.bf16.mxu0 0
    %418 = vmatpush1.bf16.msra.mxu0 0
    %419 = vmatprep.subr.bf16.mxu0 0
    %420 = vmatpush1.bf16.msra.mxu0 0
    %421 = vmatprep.subr.bf16.mxu0 0
    %422 = vmatpush1.bf16.msra.mxu0 0
    %423 = vmatprep.subr.bf16.mxu0 0
    %424 = vmatpush1.bf16.msra.mxu0 0
    %425 = vmatprep.subr.bf16.mxu0 0
    %426 = vmatpush1.bf16.msra.mxu0 0
    %427 = vmatprep.subr.bf16.mxu0 0
    %428 = vmatpush1.bf16.msra.mxu0 0
    %429 = vmatprep.subr.bf16.mxu0 0
    %430 = vmatpush1.bf16.msra.mxu0 0
    %431 = vmatprep.mubr.bf16.mxu0 0
    %432 = vmatmul.mubr.bf16.gmra.mrb[0].mxu0 %v158
    %v433 = vpop.f32.mrb[0].mxu0
    %v434 = vadd.f32 %v133, %v433
    %v435 = vpop.f32.mrb[0].mxu0
    %v436 = vadd.f32 %v137, %v435
    %v437 = vpop.f32.mrb[0].mxu0
    %v438 = vadd.f32 %v133, %v437
    %v439 = vpop.f32.mrb[0].mxu0
    %v440 = vadd.f32 %v137, %v439
    %441 = vmatprep.mubr.bf16.mxu0 0
    %442 = vmatmul.mubr.bf16.gmra.mrb[0].mxu0 %v159
    %v443 = vpop.f32.mrb[0].mxu0
    %v444 = vadd.f32 %v133, %v443
    %v445 = vpop.f32.mrb[0].mxu0
    %v446 = vadd.f32 %v137, %v445
    %v447 = vpop.f32.mrb[0].mxu0
    %v448 = vadd.f32 %v133, %v447
    %v449 = vpop.f32.mrb[0].mxu0
    %v450 = vadd.f32 %v137, %v449
    %451 = vmatprep.mubr.bf16.mxu0 0
    %452 = vmatmul.mubr.bf16.gmra.mrb[0].mxu0 %v160
    %v453 = vpop.f32.mrb[0].mxu0
    %v454 = vadd.f32 %v133, %v453
    %v455 = vpop.f32.mrb[0].mxu0
    %v456 = vadd.f32 %v137, %v455
    %v457 = vpop.f32.mrb[0].mxu0
    %v458 = vadd.f32 %v133, %v457
    %v459 = vpop.f32.mrb[0].mxu0
    %v460 = vadd.f32 %v137, %v459
    %461 = vmatprep.mubr.bf16.mxu0 0
    %462 = vmatmul.mubr.bf16.gmra.mrb[0].mxu0 %v161
    %v463 = vpop.f32.mrb[0].mxu0
    %v464 = vadd.f32 %v133, %v463
    %v465 = vpop.f32.mrb[0].mxu0
    %v466 = vadd.f32 %v137, %v465
    %v467 = vpop.f32.mrb[0].mxu0
    %v468 = vadd.f32 %v133, %v467
    %v469 = vpop.f32.mrb[0].mxu0
    %v470 = vadd.f32 %v137, %v469
    %471 = vdwg.mxu0
    %v472 = vxor.u32 %v434, 2147483648
    %v473 = vxor.u32 %v438, 2147483648
    %v474 = vxor.u32 %v444, 2147483648
    %v475 = vxor.u32 %v448, 2147483648
    %v476 = vxor.u32 %v454, 2147483648
    %v477 = vxor.u32 %v458, 2147483648
    %v478 = vxor.u32 %v464, 2147483648
    %v479 = vxor.u32 %v468, 2147483648
    %v480 = vmul.f32 %v472, 1.442695
    %v481 = vpow.pop %v480
    %v482 = vmul.f32 %v473, 1.442695
    %v483 = vpow.pop %v482
    %v484 = vmul.f32 %v474, 1.442695
    %v485 = vpow.pop %v484
    %v486 = vmul.f32 %v475, 1.442695
    %v487 = vpow.pop %v486
    %v488 = vmul.f32 %v476, 1.442695
    %v489 = vpow.pop %v488
    %v490 = vmul.f32 %v477, 1.442695
    %v491 = vpow.pop %v490
    %v492 = vmul.f32 %v478, 1.442695
    %v493 = vpow.pop %v492
    %v494 = vmul.f32 %v479, 1.442695
    %v495 = vpow.pop %v494
    %v496 = vadd.f32 %v481, 1.0
    %v497 = vadd.f32 %v483, 1.0
    %v498 = vadd.f32 %v485, 1.0
    %v499 = vadd.f32 %v487, 1.0
    %v500 = vadd.f32 %v489, 1.0
    %v501 = vadd.f32 %v491, 1.0
    %v502 = vadd.f32 %v493, 1.0
    %v503 = vadd.f32 %v495, 1.0
    %v504 = vrcp.pop %v496
    %v505 = vmul.f32 1.0, %v504
    %v506 = vrcp.pop %v497
    %v507 = vmul.f32 1.0, %v506
    %v508 = vrcp.pop %v498
    %v509 = vmul.f32 1.0, %v508
    %v510 = vrcp.pop %v499
    %v511 = vmul.f32 1.0, %v510
    %v512 = vrcp.pop %v500
    %v513 = vmul.f32 1.0, %v512
    %v514 = vrcp.pop %v501
    %v515 = vmul.f32 1.0, %v514
    %v516 = vrcp.pop %v502
    %v517 = vmul.f32 1.0, %v516
    %v518 = vrcp.pop %v503
    %v519 = vmul.f32 1.0, %v518
    %v520 = vmul.f32 %v363, %v505
    %v521 = vmul.f32 %v367, %v507
    %v522 = vmul.f32 %v373, %v509
    %v523 = vmul.f32 %v377, %v511
    %v524 = vmul.f32 %v383, %v513
    %v525 = vmul.f32 %v387, %v515
    %v526 = vmul.f32 %v393, %v517
    %v527 = vmul.f32 %v397, %v519
    %v528 = vadd.f32 %v520, %v436
    %v529 = vadd.f32 %v521, %v440
    %v530 = vadd.f32 %v522, %v446
    %v531 = vadd.f32 %v523, %v450
    %v532 = vadd.f32 %v524, %v456
    %v533 = vadd.f32 %v525, %v460
    %v534 = vadd.f32 %v526, %v466
    %v535 = vadd.f32 %v527, %v470
    %v536 = vmax.f32 %v528, 0.0
    %v537 = vmax.f32 %v529, 0.0
    %v538 = vmax.f32 %v530, 0.0
    %v539 = vmax.f32 %v531, 0.0
    %v540 = vmax.f32 %v532, 0.0
    %v541 = vmax.f32 %v533, 0.0
    %v542 = vmax.f32 %v534, 0.0
    %v543 = vmax.f32 %v535, 0.0
    %v544 = vld [vmem:[%s9] sm:$0x1]
    %v545 = vld [vmem:[%s10] sm:$0x1]
    %v546 = vadd.f32 %v536, %v537
    %v547 = vadd.f32 %v546, %v538
    %v548 = vadd.f32 %v547, %v539
    %v549 = vadd.f32 %v548, %v540
    %v550 = vadd.f32 %v549, %v541
    %v551 = vadd.f32 %v550, %v542
    %v552 = vadd.f32 %v551, %v543
    %v553 = vrot.slane %v552, 4
    %v554 = vadd.f32 %v552, %v553
    %v555 = vrot.slane %v554, 2
    %v556 = vadd.f32 %v554, %v555
    %v557 = vrot.slane %v556, 1
    %v558 = vadd.f32 %v556, %v557
    %v559 = vld [vmem:[#allocation6] sm:$0xff]
    %v560 = vld [vmem:[#allocation6 + $0x8] sm:$0xff]
    %v561 = vld [vmem:[#allocation6 + $0x10] sm:$0xff]
    %v562 = vld [vmem:[#allocation6 + $0x18] sm:$0xff]
    %v563 = vld [vmem:[#allocation6 + $0x20] sm:$0xff]
    %v564 = vld [vmem:[#allocation6 + $0x28] sm:$0xff]
    %v565 = vld [vmem:[#allocation6 + $0x30] sm:$0xff]
    %v566 = vld [vmem:[#allocation6 + $0x38] sm:$0xff]
    %v567 = vld [vmem:[#allocation6 + $0x40] sm:$0xff]
    %v568 = vld [vmem:[#allocation6 + $0x48] sm:$0xff]
    %v569 = vld [vmem:[#allocation6 + $0x50] sm:$0xff]
    %v570 = vld [vmem:[#allocation6 + $0x58] sm:$0xff]
    %v571 = vld [vmem:[#allocation6 + $0x60] sm:$0xff]
    %v572 = vld [vmem:[#allocation6 + $0x68] sm:$0xff]
    %v573 = vld [vmem:[#allocation6 + $0x70] sm:$0xff]
    %v574 = vld [vmem:[#allocation6 + $0x78] sm:$0xff]
    %575 = vmatprep.subr.mxu0 0.0
    %576 = vmatpush1.msra.mxu0 %v559
    %577 = vmatprep.subr.mxu0 0.0
    %578 = vmatpush1.msra.mxu0 %v560
    %579 = vmatprep.subr.mxu0 0.0
    %580 = vmatpush1.msra.mxu0 %v561
    %581 = vmatprep.subr.mxu0 0.0
    %582 = vmatpush1.msra.mxu0 %v562
    %583 = vmatprep.subr.mxu0 0.0
    %584 = vmatpush1.msra.mxu0 %v563
    %585 = vmatprep.subr.mxu0 0.0
    %586 = vmatpush1.msra.mxu0 %v564
    %587 = vmatprep.subr.mxu0 0.0
    %588 = vmatpush1.msra.mxu0 %v565
    %589 = vmatprep.subr.mxu0 0.0
    %590 = vmatpush1.msra.mxu0 %v566
    %591 = vmatprep.subr.mxu0 0.0
    %592 = vmatpush1.msra.mxu0 %v567
    %593 = vmatprep.subr.mxu0 0.0
    %594 = vmatpush1.msra.mxu0 %v568
    %595 = vmatprep.subr.mxu0 0.0
    %596 = vmatpush1.msra.mxu0 %v569
    %597 = vmatprep.subr.mxu0 0.0
    %598 = vmatpush1.msra.mxu0 %v570
    %599 = vmatprep.subr.mxu0 0.0
    %600 = vmatpush1.msra.mxu0 %v571
    %601 = vmatprep.subr.mxu0 0.0
    %602 = vmatpush1.msra.mxu0 %v572
    %603 = vmatprep.subr.mxu0 0.0
    %604 = vmatpush1.msra.mxu0 %v573
    %605 = vmatprep.subr.mxu0 0.0
    %606 = vmatpush1.msra.mxu0 %v574
    %607 = vmatprep.subr.mxu0 0.0
    %608 = vmatpush1.msra.mxu0 0.0
    %609 = vmatprep.subr.mxu0 0.0
    %610 = vmatpush1.msra.mxu0 0.0
    %611 = vmatprep.subr.mxu0 0.0
    %612 = vmatpush1.msra.mxu0 0.0
    %613 = vmatprep.subr.mxu0 0.0
    %614 = vmatpush1.msra.mxu0 0.0
    %615 = vmatprep.subr.mxu0 0.0
    %616 = vmatpush1.msra.mxu0 0.0
    %617 = vmatprep.subr.mxu0 0.0
    %618 = vmatpush1.msra.mxu0 0.0
    %619 = vmatprep.subr.mxu0 0.0
    %620 = vmatpush1.msra.mxu0 0.0
    %621 = vmatprep.subr.mxu0 0.0
    %622 = vmatpush1.msra.mxu0 0.0
    %623 = vmatprep.subr.mxu0 0.0
    %624 = vmatpush1.msra.mxu0 0.0
    %625 = vmatprep.subr.mxu0 0.0
    %626 = vmatpush1.msra.mxu0 0.0
    %627 = vmatprep.subr.mxu0 0.0
    %628 = vmatpush1.msra.mxu0 0.0
    %629 = vmatprep.subr.mxu0 0.0
    %630 = vmatpush1.msra.mxu0 0.0
    %631 = vmatprep.subr.mxu0 0.0
    %632 = vmatpush1.msra.mxu0 0.0
    %633 = vmatprep.subr.mxu0 0.0
    %634 = vmatpush1.msra.mxu0 0.0
    %635 = vmatprep.subr.mxu0 0.0
    %636 = vmatpush1.msra.mxu0 0.0
    %637 = vmatprep.subr.mxu0 0.0
    %638 = vmatpush1.msra.mxu0 0.0
    %639 = vmatprep.mubr.f32.mxu0 0.0
    %640 = vmatmul.mubr.f32.gmra.mrb[0].mxu0 %v558
    %v641 = vpop.f32.mrb[0].mxu0
    %v642 = vadd.f32 0.0, %v641
    %v643 = vpop.f32.mrb[0].mxu0
    %644 = vdwg.mxu0
    %v645 = vmul.f32 %v642, 0.001953125
    %v646 = vlaneseq
    %v647 = vshrl.u32 %v646, 7
    %v648 = vsub.s32 0, %v647
    %v649 = vrot.slane %v645, %v648
    %v650 = vsub.f32 %v536, %v649
    %v651 = vsub.f32 %v537, %v649
    %v652 = vsub.f32 %v538, %v649
    %v653 = vsub.f32 %v539, %v649
    %v654 = vsub.f32 %v540, %v649
    %v655 = vsub.f32 %v541, %v649
    %v656 = vsub.f32 %v542, %v649
    %v657 = vsub.f32 %v543, %v649
    %v658 = vmul.f32 %v650, %v650
    %v659 = vmul.f32 %v651, %v651
    %v660 = vmul.f32 %v652, %v652
    %v661 = vmul.f32 %v653, %v653
    %v662 = vmul.f32 %v654, %v654
    %v663 = vmul.f32 %v655, %v655
    %v664 = vmul.f32 %v656, %v656
    %v665 = vmul.f32 %v657, %v657
    %v666 = vadd.f32 %v658, %v659
    %v667 = vadd.f32 %v666, %v660
    %v668 = vadd.f32 %v667, %v661
    %v669 = vadd.f32 %v668, %v662
    %v670 = vadd.f32 %v669, %v663
    %v671 = vadd.f32 %v670, %v664
    %v672 = vadd.f32 %v671, %v665
    %v673 = vrot.slane %v672, 4
    %v674 = vadd.f32 %v672, %v673
    %v675 = vrot.slane %v674, 2
    %v676 = vadd.f32 %v674, %v675
    %v677 = vrot.slane %v676, 1
    %v678 = vadd.f32 %v676, %v677
    %679 = vmatprep.subr.mxu0 0.0
    %680 = vmatpush1.msra.mxu0 %v559
    %681 = vmatprep.subr.mxu0 0.0
    %682 = vmatpush1.msra.mxu0 %v560
    %683 = vmatprep.subr.mxu0 0.0
    %684 = vmatpush1.msra.mxu0 %v561
    %685 = vmatprep.subr.mxu0 0.0
    %686 = vmatpush1.msra.mxu0 %v562
    %687 = vmatprep.subr.mxu0 0.0
    %688 = vmatpush1.msra.mxu0 %v563
    %689 = vmatprep.subr.mxu0 0.0
    %690 = vmatpush1.msra.mxu0 %v564
    %691 = vmatprep.subr.mxu0 0.0
    %692 = vmatpush1.msra.mxu0 %v565
    %693 = vmatprep.subr.mxu0 0.0
    %694 = vmatpush1.msra.mxu0 %v566
    %695 = vmatprep.subr.mxu0 0.0
    %696 = vmatpush1.msra.mxu0 %v567
    %697 = vmatprep.subr.mxu0 0.0
    %698 = vmatpush1.msra.mxu0 %v568
    %699 = vmatprep.subr.mxu0 0.0
    %700 = vmatpush1.msra.mxu0 %v569
    %701 = vmatprep.subr.mxu0 0.0
    %702 = vmatpush1.msra.mxu0 %v570
    %703 = vmatprep.subr.mxu0 0.0
    %704 = vmatpush1.msra.mxu0 %v571
    %705 = vmatprep.subr.mxu0 0.0
    %706 = vmatpush1.msra.mxu0 %v572
    %707 = vmatprep.subr.mxu0 0.0
    %708 = vmatpush1.msra.mxu0 %v573
    %709 = vmatprep.subr.mxu0 0.0
    %710 = vmatpush1.msra.mxu0 %v574
    %711 = vmatprep.subr.mxu0 0.0
    %712 = vmatpush1.msra.mxu0 0.0
    %713 = vmatprep.subr.mxu0 0.0
    %714 = vmatpush1.msra.mxu0 0.0
    %715 = vmatprep.subr.mxu0 0.0
    %716 = vmatpush1.msra.mxu0 0.0
    %717 = vmatprep.subr.mxu0 0.0
    %718 = vmatpush1.msra.mxu0 0.0
    %719 = vmatprep.subr.mxu0 0.0
    %720 = vmatpush1.msra.mxu0 0.0
    %721 = vmatprep.subr.mxu0 0.0
    %722 = vmatpush1.msra.mxu0 0.0
    %723 = vmatprep.subr.mxu0 0.0
    %724 = vmatpush1.msra.mxu0 0.0
    %725 = vmatprep.subr.mxu0 0.0
    %726 = vmatpush1.msra.mxu0 0.0
    %727 = vmatprep.subr.mxu0 0.0
    %728 = vmatpush1.msra.mxu0 0.0
    %729 = vmatprep.subr.mxu0 0.0
    %730 = vmatpush1.msra.mxu0 0.0
    %731 = vmatprep.subr.mxu0 0.0
    %732 = vmatpush1.msra.mxu0 0.0
    %733 = vmatprep.subr.mxu0 0.0
    %734 = vmatpush1.msra.mxu0 0.0
    %735 = vmatprep.subr.mxu0 0.0
    %736 = vmatpush1.msra.mxu0 0.0
    %737 = vmatprep.subr.mxu0 0.0
    %738 = vmatpush1.msra.mxu0 0.0
    %739 = vmatprep.subr.mxu0 0.0
    %740 = vmatpush1.msra.mxu0 0.0
    %741 = vmatprep.subr.mxu0 0.0
    %742 = vmatpush1.msra.mxu0 0.0
    %743 = vmatprep.mubr.f32.mxu0 0.0
    %744 = vmatmul.mubr.f32.gmra.mrb[0].mxu0 %v678
    %v745 = vpop.f32.mrb[0].mxu0
    %v746 = vadd.f32 0.0, %v745
    %v747 = vpop.f32.mrb[0].mxu0
    %748 = vdwg.mxu0
    %v749 = vmul.f32 %v746, 0.001953125
    %v750 = vadd.f32 %v749, 1e-05
    %v751 = vrsqrt.pop %v750
    %v752 = vlaneseq
    %v753 = vshrl.u32 %v752, 7
    %v754 = vsub.s32 0, %v753
    %v755 = vrot.slane %v751, %v754
    %v756 = vmul.f32 %v650, %v755
    %v757 = vmul.f32 %v651, %v755
    %v758 = vmul.f32 %v652, %v755
    %v759 = vmul.f32 %v653, %v755
    %v760 = vmul.f32 %v654, %v755
    %v761 = vmul.f32 %v655, %v755
    %v762 = vmul.f32 %v656, %v755
    %v763 = vmul.f32 %v657, %v755
    %v764 = vlaneseq
    %v765 = vshrl.u32 %v764, 7
    %v766 = vsub.s32 0, %v765
    %v767 = vrot.slane %v544, %v766
    %v768 = vmul.f32 %v756, %v767
    %v769 = vmul.f32 %v757, %v767
    %v770 = vmul.f32 %v758, %v767
    %v771 = vmul.f32 %v759, %v767
    %v772 = vmul.f32 %v760, %v767
    %v773 = vmul.f32 %v761, %v767
    %v774 = vmul.f32 %v762, %v767
    %v775 = vmul.f32 %v763, %v767
    %v776 = vlaneseq
    %v777 = vshrl.u32 %v776, 7
    %v778 = vsub.s32 0, %v777
    %v779 = vrot.slane %v545, %v778
    %v780 = vadd.f32 %v768, %v779
    %v781 = vadd.f32 %v769, %v779
    %v782 = vadd.f32 %v770, %v779
    %v783 = vadd.f32 %v771, %v779
    %v784 = vadd.f32 %v772, %v779
    %v785 = vadd.f32 %v773, %v779
    %v786 = vadd.f32 %v774, %v779
    %v787 = vadd.f32 %v775, %v779
    %v788 = vpack.c.bf16 %v781, %v780
    %v789 = vpack.c.bf16 %v783, %v782
    %v790 = vpack.c.bf16 %v785, %v784
    %v791 = vpack.c.bf16 %v787, %v786
    %v792 = vld [vmem:[#allocation2] sm:$0xf]
    %v793 = vld [vmem:[#allocation2 + $0x4] sm:$0xf]
    %v794 = vld [vmem:[#allocation2 + $0x8] sm:$0xf]
    %v795 = vld [vmem:[#allocation2 + $0xc] sm:$0xf]
    %v796 = vld [vmem:[#allocation2 + $0x10] sm:$0xf]
    %v797 = vld [vmem:[#allocation2 + $0x14] sm:$0xf]
    %v798 = vld [vmem:[#allocation2 + $0x18] sm:$0xf]
    %v799 = vld [vmem:[#allocation2 + $0x1c] sm:$0xf]
    %v800 = vld [vmem:[#allocation2 + $0x20] sm:$0xf]
    %v801 = vld [vmem:[#allocation2 + $0x24] sm:$0xf]
    %v802 = vld [vmem:[#allocation2 + $0x28] sm:$0xf]
    %v803 = vld [vmem:[#allocation2 + $0x2c] sm:$0xf]
    %v804 = vld [vmem:[#allocation2 + $0x30] sm:$0xf]
    %v805 = vld [vmem:[#allocation2 + $0x34] sm:$0xf]
    %v806 = vld [vmem:[#allocation2 + $0x38] sm:$0xf]
    %v807 = vld [vmem:[#allocation2 + $0x3c] sm:$0xf]
    %v824 = vunpack.c.l.b16 %v792
    %v825 = vunpack.c.l.b16 %v793
    %v826 = vunpack.c.l.b16 %v794
    %v827 = vunpack.c.l.b16 %v795
    %v828 = vunpack.c.l.b16 %v796
    %v829 = vunpack.c.l.b16 %v797
    %v830 = vunpack.c.l.b16 %v798
    %v831 = vunpack.c.l.b16 %v799
    %v832 = vunpack.c.l.b16 %v800
    %v833 = vunpack.c.l.b16 %v801
    %v834 = vunpack.c.l.b16 %v802
    %v835 = vunpack.c.l.b16 %v803
    %v836 = vunpack.c.l.b16 %v804
    %v837 = vunpack.c.l.b16 %v805
    %v838 = vunpack.c.l.b16 %v806
    %v839 = vunpack.c.l.b16 %v807
    %v840 = vpack.c.b16 %v825, %v824
    %v841 = vpack.c.b16 %v827, %v826
    %v842 = vpack.c.b16 %v829, %v828
    %v843 = vpack.c.b16 %v831, %v830
    %v844 = vpack.c.b16 %v833, %v832
    %v845 = vpack.c.b16 %v835, %v834
    %v846 = vpack.c.b16 %v837, %v836
    %v847 = vpack.c.b16 %v839, %v838
    %856 = vmatprep.subr.bf16.mxu0 0
    %857 = vmatpush1.bf16.msra.mxu0 %v840
    %858 = vmatprep.subr.bf16.mxu0 0
    %859 = vmatpush1.bf16.msra.mxu0 %v841
    %860 = vmatprep.subr.bf16.mxu0 0
    %861 = vmatpush1.bf16.msra.mxu0 %v842
    %862 = vmatprep.subr.bf16.mxu0 0
    %863 = vmatpush1.bf16.msra.mxu0 %v843
    %864 = vmatprep.subr.bf16.mxu0 0
    %865 = vmatpush1.bf16.msra.mxu0 %v844
    %866 = vmatprep.subr.bf16.mxu0 0
    %867 = vmatpush1.bf16.msra.mxu0 %v845
    %868 = vmatprep.subr.bf16.mxu0 0
    %869 = vmatpush1.bf16.msra.mxu0 %v846
    %870 = vmatprep.subr.bf16.mxu0 0
    %871 = vmatpush1.bf16.msra.mxu0 %v847
    %872 = vmatprep.subr.bf16.mxu0 0
    %873 = vmatpush1.bf16.msra.mxu0 0
    %874 = vmatprep.subr.bf16.mxu0 0
    %875 = vmatpush1.bf16.msra.mxu0 0
    %876 = vmatprep.subr.bf16.mxu0 0
    %877 = vmatpush1.bf16.msra.mxu0 0
    %878 = vmatprep.subr.bf16.mxu0 0
    %879 = vmatpush1.bf16.msra.mxu0 0
    %880 = vmatprep.subr.bf16.mxu0 0
    %881 = vmatpush1.bf16.msra.mxu0 0
    %882 = vmatprep.subr.bf16.mxu0 0
    %883 = vmatpush1.bf16.msra.mxu0 0
    %884 = vmatprep.subr.bf16.mxu0 0
    %885 = vmatpush1.bf16.msra.mxu0 0
    %886 = vmatprep.subr.bf16.mxu0 0
    %887 = vmatpush1.bf16.msra.mxu0 0
    %888 = vmatprep.mubr.bf16.mxu0 0
    %889 = vmatmul.mubr.bf16.gmra.mrb[0].mxu0 %v788
    %v890 = vpop.f32.mrb[0].mxu0
    %v891 = vadd.f32 0.0, %v890
    %v892 = vpop.f32.mrb[0].mxu0
    %v893 = vpop.f32.mrb[0].mxu0
    %v894 = vadd.f32 0.0, %v893
    %v895 = vpop.f32.mrb[0].mxu0
    %896 = vmatprep.mubr.bf16.mxu0 0
    %897 = vmatmul.mubr.bf16.gmra.mrb[0].mxu0 %v789
    %v898 = vpop.f32.mrb[0].mxu0
    %v899 = vadd.f32 0.0, %v898
    %v900 = vpop.f32.mrb[0].mxu0
    %v901 = vpop.f32.mrb[0].mxu0
    %v902 = vadd.f32 0.0, %v901
    %v903 = vpop.f32.mrb[0].mxu0
    %904 = vmatprep.mubr.bf16.mxu0 0
    %905 = vmatmul.mubr.bf16.gmra.mrb[0].mxu0 %v790
    %v906 = vpop.f32.mrb[0].mxu0
    %v907 = vadd.f32 0.0, %v906
    %v908 = vpop.f32.mrb[0].mxu0
    %v909 = vpop.f32.mrb[0].mxu0
    %v910 = vadd.f32 0.0, %v909
    %v911 = vpop.f32.mrb[0].mxu0
    %912 = vmatprep.mubr.bf16.mxu0 0
    %913 = vmatmul.mubr.bf16.gmra.mrb[0].mxu0 %v791
    %v914 = vpop.f32.mrb[0].mxu0
    %v915 = vadd.f32 0.0, %v914
    %v916 = vpop.f32.mrb[0].mxu0
    %v917 = vpop.f32.mrb[0].mxu0
    %v918 = vadd.f32 0.0, %v917
    %v919 = vpop.f32.mrb[0].mxu0
    %920 = vdwg.mxu0
    %v921 = vld [vmem:[%s1] sm:$0xf]
    %v922 = vld [vmem:[%s1 + $0x4] sm:$0xf]
    %v923 = vld [vmem:[%s1 + $0x8] sm:$0xf]
    %v924 = vld [vmem:[%s1 + $0xc] sm:$0xf]
    %v925 = vld [vmem:[%s1 + $0x10] sm:$0xf]
    %v926 = vld [vmem:[%s1 + $0x14] sm:$0xf]
    %v927 = vld [vmem:[%s1 + $0x18] sm:$0xf]
    %v928 = vld [vmem:[%s1 + $0x1c] sm:$0xf]
    %v929 = vpack.c.bf16 %v894, %v891
    %v930 = vpack.c.bf16 %v902, %v899
    %v931 = vpack.c.bf16 %v910, %v907
    %v932 = vpack.c.bf16 %v918, %v915
    %v933 = vld [vmem:[%s5] sm:$0x1]
    %v935 = vlaneseq
    %v936 = vshrl.u32 %v935, 7
    %v937 = vsub.s32 0, %v936
    %v938 = vrot.slane %v933, %v937
    %v948 = vunpack.c.l.b16 %v921
    %v949 = vunpack.c.l.b16 %v922
    %v950 = vunpack.c.l.b16 %v923
    %v951 = vunpack.c.l.b16 %v924
    %v952 = vunpack.c.l.b16 %v925
    %v953 = vunpack.c.l.b16 %v926
    %v954 = vunpack.c.l.b16 %v927
    %v955 = vunpack.c.l.b16 %v928
    %v956 = vpack.c.b16 %v949, %v948
    %v957 = vpack.c.b16 %v951, %v950
    %v958 = vpack.c.b16 %v953, %v952
    %v959 = vpack.c.b16 %v955, %v954
    %vm960 = vcmask 523264
    %v962 = vsel %vm960, %v956, 0
    %v965 = vsel %vm960, %v957, 0
    %v968 = vsel %vm960, %v958, 0
    %v971 = vsel %vm960, %v959, 0
    %973 = vmatprep.subr.bf16.mxu0 0
    %974 = vmatpush1.bf16.msra.mxu0 %v929
    %975 = vmatprep.subr.bf16.mxu0 0
    %976 = vmatpush1.bf16.msra.mxu0 %v930
    %977 = vmatprep.subr.bf16.mxu0 0
    %978 = vmatpush1.bf16.msra.mxu0 %v931
    %979 = vmatprep.subr.bf16.mxu0 0
    %980 = vmatpush1.bf16.msra.mxu0 %v932
    %981 = vmatprep.subr.bf16.mxu0 0
    %982 = vmatpush1.bf16.msra.mxu0 0
    %983 = vmatprep.subr.bf16.mxu0 0
    %984 = vmatpush1.bf16.msra.mxu0 0
    %985 = vmatprep.subr.bf16.mxu0 0
    %986 = vmatpush1.bf16.msra.mxu0 0
    %987 = vmatprep.subr.bf16.mxu0 0
    %988 = vmatpush1.bf16.msra.mxu0 0
    %989 = vmatprep.subr.bf16.mxu0 0
    %990 = vmatpush1.bf16.msra.mxu0 0
    %991 = vmatprep.subr.bf16.mxu0 0
    %992 = vmatpush1.bf16.msra.mxu0 0
    %993 = vmatprep.subr.bf16.mxu0 0
    %994 = vmatpush1.bf16.msra.mxu0 0
    %995 = vmatprep.subr.bf16.mxu0 0
    %996 = vmatpush1.bf16.msra.mxu0 0
    %997 = vmatprep.subr.bf16.mxu0 0
    %998 = vmatpush1.bf16.msra.mxu0 0
    %999 = vmatprep.subr.bf16.mxu0 0
    %1000 = vmatpush1.bf16.msra.mxu0 0
    %1001 = vmatprep.subr.bf16.mxu0 0
    %1002 = vmatpush1.bf16.msra.mxu0 0
    %1003 = vmatprep.subr.bf16.mxu0 0
    %1004 = vmatpush1.bf16.msra.mxu0 0
    %1005 = vmatprep.mubr.bf16.mxu0 0
    %1006 = vmatmul.mubr.bf16.gmra.mrb[0].mxu0 %v962
    %v1007 = vpop.f32.mrb[0].mxu0
    %v1008 = vadd.f32 %v938, %v1007
    %v1009 = vpop.f32.mrb[0].mxu0
    %v1010 = vpop.f32.mrb[0].mxu0
    %v1011 = vadd.f32 %v938, %v1010
    %v1012 = vpop.f32.mrb[0].mxu0
    %1013 = vmatprep.mubr.bf16.mxu0 0
    %1014 = vmatmul.mubr.bf16.gmra.mrb[0].mxu0 %v965
    %v1015 = vpop.f32.mrb[0].mxu0
    %v1016 = vadd.f32 %v938, %v1015
    %v1017 = vpop.f32.mrb[0].mxu0
    %v1018 = vpop.f32.mrb[0].mxu0
    %v1019 = vadd.f32 %v938, %v1018
    %v1020 = vpop.f32.mrb[0].mxu0
    %1021 = vmatprep.mubr.bf16.mxu0 0
    %1022 = vmatmul.mubr.bf16.gmra.mrb[0].mxu0 %v968
    %v1023 = vpop.f32.mrb[0].mxu0
    %v1024 = vadd.f32 %v938, %v1023
    %v1025 = vpop.f32.mrb[0].mxu0
    %v1026 = vpop.f32.mrb[0].mxu0
    %v1027 = vadd.f32 %v938, %v1026
    %v1028 = vpop.f32.mrb[0].mxu0
    %1029 = vmatprep.mubr.bf16.mxu0 0
    %1030 = vmatmul.mubr.bf16.gmra.mrb[0].mxu0 %v971
    %v1031 = vpop.f32.mrb[0].mxu0
    %v1032 = vadd.f32 %v938, %v1031
    %v1033 = vpop.f32.mrb[0].mxu0
    %v1034 = vpop.f32.mrb[0].mxu0
    %v1035 = vadd.f32 %v938, %v1034
    %v1036 = vpop.f32.mrb[0].mxu0
    %1037 = vdwg.mxu0
    %v1038 = vld [vmem:[%s9 + $0x1] sm:$0x1]
    %v1039 = vld [vmem:[%s10 + $0x1] sm:$0x1]
    %v1040 = vadd.f32 %v1008, %v1011
    %v1041 = vadd.f32 %v1040, %v1016
    %v1042 = vadd.f32 %v1041, %v1019
    %v1043 = vadd.f32 %v1042, %v1024
    %v1044 = vadd.f32 %v1043, %v1027
    %v1045 = vadd.f32 %v1044, %v1032
    %v1046 = vadd.f32 %v1045, %v1035
    %v1047 = vrot.slane %v1046, 4
    %v1048 = vadd.f32 %v1046, %v1047
    %v1049 = vrot.slane %v1048, 2
    %v1050 = vadd.f32 %v1048, %v1049
    %v1051 = vrot.slane %v1050, 1
    %v1052 = vadd.f32 %v1050, %v1051
    %v1053 = vmul.f32 %v1052, 0.015625
    %v1054 = vsub.f32 %v1008, %v1053
    %v1055 = vsub.f32 %v1011, %v1053
    %v1056 = vsub.f32 %v1016, %v1053
    %v1057 = vsub.f32 %v1019, %v1053
    %v1058 = vsub.f32 %v1024, %v1053
    %v1059 = vsub.f32 %v1027, %v1053
    %v1060 = vsub.f32 %v1032, %v1053
    %v1061 = vsub.f32 %v1035, %v1053
    %v1062 = vmul.f32 %v1054, %v1054
    %v1063 = vmul.f32 %v1055, %v1055
    %v1064 = vmul.f32 %v1056, %v1056
    %v1065 = vmul.f32 %v1057, %v1057
    %v1066 = vmul.f32 %v1058, %v1058
    %v1067 = vmul.f32 %v1059, %v1059
    %v1068 = vmul.f32 %v1060, %v1060
    %v1069 = vmul.f32 %v1061, %v1061
    %v1070 = vadd.f32 %v1062, %v1063
    %v1071 = vadd.f32 %v1070, %v1064
    %v1072 = vadd.f32 %v1071, %v1065
    %v1073 = vadd.f32 %v1072, %v1066
    %v1074 = vadd.f32 %v1073, %v1067
    %v1075 = vadd.f32 %v1074, %v1068
    %v1076 = vadd.f32 %v1075, %v1069
    %v1077 = vrot.slane %v1076, 4
    %v1078 = vadd.f32 %v1076, %v1077
    %v1079 = vrot.slane %v1078, 2
    %v1080 = vadd.f32 %v1078, %v1079
    %v1081 = vrot.slane %v1080, 1
    %v1082 = vadd.f32 %v1080, %v1081
    %v1083 = vmul.f32 %v1082, 0.015625
    %v1084 = vadd.f32 %v1083, 1e-05
    %v1085 = vrsqrt.pop %v1084
    %v1086 = vmul.f32 %v1054, %v1085
    %v1087 = vmul.f32 %v1055, %v1085
    %v1088 = vmul.f32 %v1056, %v1085
    %v1089 = vmul.f32 %v1057, %v1085
    %v1090 = vmul.f32 %v1058, %v1085
    %v1091 = vmul.f32 %v1059, %v1085
    %v1092 = vmul.f32 %v1060, %v1085
    %v1093 = vmul.f32 %v1061, %v1085
    %v1094 = vlaneseq
    %v1095 = vshrl.u32 %v1094, 7
    %v1096 = vsub.s32 0, %v1095
    %v1097 = vrot.slane %v1038, %v1096
    %v1098 = vmul.f32 %v1086, %v1097
    %v1099 = vmul.f32 %v1087, %v1097
    %v1100 = vmul.f32 %v1088, %v1097
    %v1101 = vmul.f32 %v1089, %v1097
    %v1102 = vmul.f32 %v1090, %v1097
    %v1103 = vmul.f32 %v1091, %v1097
    %v1104 = vmul.f32 %v1092, %v1097
    %v1105 = vmul.f32 %v1093, %v1097
    %v1106 = vlaneseq
    %v1107 = vshrl.u32 %v1106, 7
    %v1108 = vsub.s32 0, %v1107
    %v1109 = vrot.slane %v1039, %v1108
    %v1110 = vadd.f32 %v1098, %v1109
    %v1111 = vadd.f32 %v1099, %v1109
    %v1112 = vadd.f32 %v1100, %v1109
    %v1113 = vadd.f32 %v1101, %v1109
    %v1114 = vadd.f32 %v1102, %v1109
    %v1115 = vadd.f32 %v1103, %v1109
    %v1116 = vadd.f32 %v1104, %v1109
    %v1117 = vadd.f32 %v1105, %v1109
    %v1118 = vpack.c.bf16 %v1111, %v1110
    %v1119 = vpack.c.bf16 %v1113, %v1112
    %v1120 = vpack.c.bf16 %v1115, %v1114
    %v1121 = vpack.c.bf16 %v1117, %v1116
    %v1122 = vld [vmem:[#allocation4] sm:$0xff]
    %v1123 = vld [vmem:[#allocation4 + $0x8] sm:$0xf]
    %v1124 = vld [vmem:[#allocation4 + $0xc] sm:$0xff]
    %v1125 = vld [vmem:[#allocation4 + $0x14] sm:$0xf]
    %v1126 = vld [vmem:[#allocation4 + $0x18] sm:$0xff]
    %v1127 = vld [vmem:[#allocation4 + $0x20] sm:$0xf]
    %v1128 = vld [vmem:[#allocation4 + $0x24] sm:$0xff]
    %v1129 = vld [vmem:[#allocation4 + $0x2c] sm:$0xf]
    %v1130 = vld [vmem:[#allocation4 + $0x30] sm:$0xff]
    %v1131 = vld [vmem:[#allocation4 + $0x38] sm:$0xf]
    %v1132 = vld [vmem:[#allocation4 + $0x3c] sm:$0xff]
    %v1133 = vld [vmem:[#allocation4 + $0x44] sm:$0xf]
    %v1134 = vld [vmem:[#allocation4 + $0x48] sm:$0xff]
    %v1135 = vld [vmem:[#allocation4 + $0x50] sm:$0xf]
    %v1136 = vld [vmem:[#allocation4 + $0x54] sm:$0xff]
    %v1137 = vld [vmem:[#allocation4 + $0x5c] sm:$0xf]
    %v1138 = vld [vmem:[#allocation4 + $0x60] sm:$0xff]
    %v1139 = vld [vmem:[#allocation4 + $0x68] sm:$0xf]
    %v1140 = vld [vmem:[#allocation4 + $0x6c] sm:$0xff]
    %v1141 = vld [vmem:[#allocation4 + $0x74] sm:$0xf]
    %v1142 = vld [vmem:[#allocation4 + $0x78] sm:$0xff]
    %v1143 = vld [vmem:[#allocation4 + $0x80] sm:$0xf]
    %v1144 = vld [vmem:[#allocation4 + $0x84] sm:$0xff]
    %v1145 = vld [vmem:[#allocation4 + $0x8c] sm:$0xf]
    %v1146 = vld [vmem:[#allocation4 + $0x90] sm:$0xff]
    %v1147 = vld [vmem:[#allocation4 + $0x98] sm:$0xf]
    %v1148 = vld [vmem:[#allocation4 + $0x9c] sm:$0xff]
    %v1149 = vld [vmem:[#allocation4 + $0xa4] sm:$0xf]
    %v1150 = vld [vmem:[#allocation4 + $0xa8] sm:$0xff]
    %v1151 = vld [vmem:[#allocation4 + $0xb0] sm:$0xf]
    %v1152 = vld [vmem:[#allocation4 + $0xb4] sm:$0xff]
    %v1153 = vld [vmem:[#allocation4 + $0xbc] sm:$0xf]
    %v1154 = vld [vmem:[%s7] sm:$0x7]
    %v1156 = vlaneseq
    %v1157 = vshrl.u32 %v1156, 7
    %v1158 = vsub.s32 0, %v1157
    %v1159 = vrot.slane %v1154, %v1158
    %v1160 = vlaneseq
    %v1161 = vshrl.u32 %v1160, 7
    %v1162 = vsub.s32 1, %v1161
    %v1163 = vrot.slane %v1154, %v1162
    %v1164 = vlaneseq
    %v1165 = vshrl.u32 %v1164, 7
    %v1166 = vsub.s32 2, %v1165
    %v1167 = vrot.slane %v1154, %v1166
    %v1203 = vunpack.c.l.b16 %v1122
    %v1204 = vunpack.c.h.b16 %v1122
    %v1205 = vunpack.c.l.b16 %v1123
    %v1206 = vunpack.c.l.b16 %v1124
    %v1207 = vunpack.c.h.b16 %v1124
    %v1208 = vunpack.c.l.b16 %v1125
    %v1209 = vunpack.c.l.b16 %v1126
    %v1210 = vunpack.c.h.b16 %v1126
    %v1211 = vunpack.c.l.b16 %v1127
    %v1212 = vunpack.c.l.b16 %v1128
    %v1213 = vunpack.c.h.b16 %v1128
    %v1214 = vunpack.c.l.b16 %v1129
    %v1215 = vunpack.c.l.b16 %v1130
    %v1216 = vunpack.c.h.b16 %v1130
    %v1217 = vunpack.c.l.b16 %v1131
    %v1218 = vunpack.c.l.b16 %v1132
    %v1219 = vunpack.c.h.b16 %v1132
    %v1220 = vunpack.c.l.b16 %v1133
    %v1221 = vunpack.c.l.b16 %v1134
    %v1222 = vunpack.c.h.b16 %v1134
    %v1223 = vunpack.c.l.b16 %v1135
    %v1224 = vunpack.c.l.b16 %v1136
    %v1225 = vunpack.c.h.b16 %v1136
    %v1226 = vunpack.c.l.b16 %v1137
    %v1227 = vunpack.c.l.b16 %v1138
    %v1228 = vunpack.c.h.b16 %v1138
    %v1229 = vunpack.c.l.b16 %v1139
    %v1230 = vunpack.c.l.b16 %v1140
    %v1231 = vunpack.c.h.b16 %v1140
    %v1232 = vunpack.c.l.b16 %v1141
    %v1233 = vunpack.c.l.b16 %v1142
    %v1234 = vunpack.c.h.b16 %v1142
    %v1235 = vunpack.c.l.b16 %v1143
    %v1236 = vunpack.c.l.b16 %v1144
    %v1237 = vunpack.c.h.b16 %v1144
    %v1238 = vunpack.c.l.b16 %v1145
    %v1239 = vunpack.c.l.b16 %v1146
    %v1240 = vunpack.c.h.b16 %v1146
    %v1241 = vunpack.c.l.b16 %v1147
    %v1242 = vunpack.c.l.b16 %v1148
    %v1243 = vunpack.c.h.b16 %v1148
    %v1244 = vunpack.c.l.b16 %v1149
    %v1245 = vunpack.c.l.b16 %v1150
    %v1246 = vunpack.c.h.b16 %v1150
    %v1247 = vunpack.c.l.b16 %v1151
    %v1248 = vunpack.c.l.b16 %v1152
    %v1249 = vunpack.c.h.b16 %v1152
    %v1250 = vunpack.c.l.b16 %v1153
    %v1251 = vpack.c.b16 %v1206, %v1203
    %v1252 = vpack.c.b16 %v1207, %v1204
    %v1253 = vpack.c.b16 %v1208, %v1205
    %v1254 = vpack.c.b16 %v1212, %v1209
    %v1255 = vpack.c.b16 %v1213, %v1210
    %v1256 = vpack.c.b16 %v1214, %v1211
    %v1257 = vpack.c.b16 %v1218, %v1215
    %v1258 = vpack.c.b16 %v1219, %v1216
    %v1259 = vpack.c.b16 %v1220, %v1217
    %v1260 = vpack.c.b16 %v1224, %v1221
    %v1261 = vpack.c.b16 %v1225, %v1222
    %v1262 = vpack.c.b16 %v1226, %v1223
    %v1263 = vpack.c.b16 %v1230, %v1227
    %v1264 = vpack.c.b16 %v1231, %v1228
    %v1265 = vpack.c.b16 %v1232, %v1229
    %v1266 = vpack.c.b16 %v1236, %v1233
    %v1267 = vpack.c.b16 %v1237, %v1234
    %v1268 = vpack.c.b16 %v1238, %v1235
    %v1269 = vpack.c.b16 %v1242, %v1239
    %v1270 = vpack.c.b16 %v1243, %v1240
    %v1271 = vpack.c.b16 %v1244, %v1241
    %v1272 = vpack.c.b16 %v1248, %v1245
    %v1273 = vpack.c.b16 %v1249, %v1246
    %v1274 = vpack.c.b16 %v1250, %v1247
    %1299 = vmatprep.subr.bf16.mxu0 %v1252
    %1300 = vmatpush1.bf16.msra.mxu0 %v1251
    %1301 = vmatprep.subr.bf16.mxu0 %v1255
    %1302 = vmatpush1.bf16.msra.mxu0 %v1254
    %1303 = vmatprep.subr.bf16.mxu0 %v1258
    %1304 = vmatpush1.bf16.msra.mxu0 %v1257
    %1305 = vmatprep.subr.bf16.mxu0 %v1261
    %1306 = vmatpush1.bf16.msra.mxu0 %v1260
    %1307 = vmatprep.subr.bf16.mxu0 %v1264
    %1308 = vmatpush1.bf16.msra.mxu0 %v1263
    %1309 = vmatprep.subr.bf16.mxu0 %v1267
    %1310 = vmatpush1.bf16.msra.mxu0 %v1266
    %1311 = vmatprep.subr.bf16.mxu0 %v1270
    %1312 = vmatpush1.bf16.msra.mxu0 %v1269
    %1313 = vmatprep.subr.bf16.mxu0 %v1273
    %1314 = vmatpush1.bf16.msra.mxu0 %v1272
    %1315 = vmatprep.subr.bf16.mxu0 0
    %1316 = vmatpush1.bf16.msra.mxu0 0
    %1317 = vmatprep.subr.bf16.mxu0 0
    %1318 = vmatpush1.bf16.msra.mxu0 0
    %1319 = vmatprep.subr.bf16.mxu0 0
    %1320 = vmatpush1.bf16.msra.mxu0 0
    %1321 = vmatprep.subr.bf16.mxu0 0
    %1322 = vmatpush1.bf16.msra.mxu0 0
    %1323 = vmatprep.subr.bf16.mxu0 0
    %1324 = vmatpush1.bf16.msra.mxu0 0
    %1325 = vmatprep.subr.bf16.mxu0 0
    %1326 = vmatpush1.bf16.msra.mxu0 0
    %1327 = vmatprep.subr.bf16.mxu0 0
    %1328 = vmatpush1.bf16.msra.mxu0 0
    %1329 = vmatprep.subr.bf16.mxu0 0
    %1330 = vmatpush1.bf16.msra.mxu0 0
    %1331 = vmatprep.mubr.bf16.mxu0 0
    %1332 = vmatmul.mubr.bf16.gmra.mrb[0].mxu0 %v1118
    %v1333 = vpop.f32.mrb[0].mxu0
    %v1334 = vadd.f32 %v1159, %v1333
    %v1335 = vpop.f32.mrb[0].mxu0
    %v1336 = vadd.f32 %v1163, %v1335
    %v1337 = vpop.f32.mrb[0].mxu0
    %v1338 = vadd.f32 %v1159, %v1337
    %v1339 = vpop.f32.mrb[0].mxu0
    %v1340 = vadd.f32 %v1163, %v1339
    %1341 = vmatprep.mubr.bf16.mxu0 0
    %1342 = vmatmul.mubr.bf16.gmra.mrb[0].mxu0 %v1119
    %v1343 = vpop.f32.mrb[0].mxu0
    %v1344 = vadd.f32 %v1159, %v1343
    %v1345 = vpop.f32.mrb[0].mxu0
    %v1346 = vadd.f32 %v1163, %v1345
    %v1347 = vpop.f32.mrb[0].mxu0
    %v1348 = vadd.f32 %v1159, %v1347
    %v1349 = vpop.f32.mrb[0].mxu0
    %v1350 = vadd.f32 %v1163, %v1349
    %1351 = vmatprep.mubr.bf16.mxu0 0
    %1352 = vmatmul.mubr.bf16.gmra.mrb[0].mxu0 %v1120
    %v1353 = vpop.f32.mrb[0].mxu0
    %v1354 = vadd.f32 %v1159, %v1353
    %v1355 = vpop.f32.mrb[0].mxu0
    %v1356 = vadd.f32 %v1163, %v1355
    %v1357 = vpop.f32.mrb[0].mxu0
    %v1358 = vadd.f32 %v1159, %v1357
    %v1359 = vpop.f32.mrb[0].mxu0
    %v1360 = vadd.f32 %v1163, %v1359
    %1361 = vmatprep.mubr.bf16.mxu0 0
    %1362 = vmatmul.mubr.bf16.gmra.mrb[0].mxu0 %v1121
    %v1363 = vpop.f32.mrb[0].mxu0
    %v1364 = vadd.f32 %v1159, %v1363
    %v1365 = vpop.f32.mrb[0].mxu0
    %v1366 = vadd.f32 %v1163, %v1365
    %v1367 = vpop.f32.mrb[0].mxu0
    %v1368 = vadd.f32 %v1159, %v1367
    %v1369 = vpop.f32.mrb[0].mxu0
    %v1370 = vadd.f32 %v1163, %v1369
    %1371 = vdwg.mxu0
    %1372 = vmatprep.subr.bf16.mxu0 0
    %1373 = vmatpush1.bf16.msra.mxu0 %v1253
    %1374 = vmatprep.subr.bf16.mxu0 0
    %1375 = vmatpush1.bf16.msra.mxu0 %v1256
    %1376 = vmatprep.subr.bf16.mxu0 0
    %1377 = vmatpush1.bf16.msra.mxu0 %v1259
    %1378 = vmatprep.subr.bf16.mxu0 0
    %1379 = vmatpush1.bf16.msra.mxu0 %v1262
    %1380 = vmatprep.subr.bf16.mxu0 0
    %1381 = vmatpush1.bf16.msra.mxu0 %v1265
    %1382 = vmatprep.subr.bf16.mxu0 0
    %1383 = vmatpush1.bf16.msra.mxu0 %v1268
    %1384 = vmatprep.subr.bf16.mxu0 0
    %1385 = vmatpush1.bf16.msra.mxu0 %v1271
    %1386 = vmatprep.subr.bf16.mxu0 0
    %1387 = vmatpush1.bf16.msra.mxu0 %v1274
    %1388 = vmatprep.subr.bf16.mxu0 0
    %1389 = vmatpush1.bf16.msra.mxu0 0
    %1390 = vmatprep.subr.bf16.mxu0 0
    %1391 = vmatpush1.bf16.msra.mxu0 0
    %1392 = vmatprep.subr.bf16.mxu0 0
    %1393 = vmatpush1.bf16.msra.mxu0 0
    %1394 = vmatprep.subr.bf16.mxu0 0
    %1395 = vmatpush1.bf16.msra.mxu0 0
    %1396 = vmatprep.subr.bf16.mxu0 0
    %1397 = vmatpush1.bf16.msra.mxu0 0
    %1398 = vmatprep.subr.bf16.mxu0 0
    %1399 = vmatpush1.bf16.msra.mxu0 0
    %1400 = vmatprep.subr.bf16.mxu0 0
    %1401 = vmatpush1.bf16.msra.mxu0 0
    %1402 = vmatprep.subr.bf16.mxu0 0
    %1403 = vmatpush1.bf16.msra.mxu0 0
    %1404 = vmatprep.mubr.bf16.mxu0 0
    %1405 = vmatmul.mubr.bf16.gmra.mrb[0].mxu0 %v1118
    %v1406 = vpop.f32.mrb[0].mxu0
    %v1407 = vadd.f32 %v1167, %v1406
    %v1408 = vpop.f32.mrb[0].mxu0
    %v1409 = vpop.f32.mrb[0].mxu0
    %v1410 = vadd.f32 %v1167, %v1409
    %v1411 = vpop.f32.mrb[0].mxu0
    %1412 = vmatprep.mubr.bf16.mxu0 0
    %1413 = vmatmul.mubr.bf16.gmra.mrb[0].mxu0 %v1119
    %v1414 = vpop.f32.mrb[0].mxu0
    %v1415 = vadd.f32 %v1167, %v1414
    %v1416 = vpop.f32.mrb[0].mxu0
    %v1417 = vpop.f32.mrb[0].mxu0
    %v1418 = vadd.f32 %v1167, %v1417
    %v1419 = vpop.f32.mrb[0].mxu0
    %1420 = vmatprep.mubr.bf16.mxu0 0
    %1421 = vmatmul.mubr.bf16.gmra.mrb[0].mxu0 %v1120
    %v1422 = vpop.f32.mrb[0].mxu0
    %v1423 = vadd.f32 %v1167, %v1422
    %v1424 = vpop.f32.mrb[0].mxu0
    %v1425 = vpop.f32.mrb[0].mxu0
    %v1426 = vadd.f32 %v1167, %v1425
    %v1427 = vpop.f32.mrb[0].mxu0
    %1428 = vmatprep.mubr.bf16.mxu0 0
    %1429 = vmatmul.mubr.bf16.gmra.mrb[0].mxu0 %v1121
    %v1430 = vpop.f32.mrb[0].mxu0
    %v1431 = vadd.f32 %v1167, %v1430
    %v1432 = vpop.f32.mrb[0].mxu0
    %v1433 = vpop.f32.mrb[0].mxu0
    %v1434 = vadd.f32 %v1167, %v1433
    %v1435 = vpop.f32.mrb[0].mxu0
    %1436 = vdwg.mxu0
    %v1437 = vxor.u32 %v1336, 2147483648
    %v1438 = vxor.u32 %v1340, 2147483648
    %v1439 = vxor.u32 %v1346, 2147483648
    %v1440 = vxor.u32 %v1350, 2147483648
    %v1441 = vxor.u32 %v1356, 2147483648
    %v1442 = vxor.u32 %v1360, 2147483648
    %v1443 = vxor.u32 %v1366, 2147483648
    %v1444 = vxor.u32 %v1370, 2147483648
    %v1445 = vmul.f32 %v1437, 1.442695
    %v1446 = vpow.pop %v1445
    %v1447 = vmul.f32 %v1438, 1.442695
    %v1448 = vpow.pop %v1447
    %v1449 = vmul.f32 %v1439, 1.442695
    %v1450 = vpow.pop %v1449
    %v1451 = vmul.f32 %v1440, 1.442695
    %v1452 = vpow.pop %v1451
    %v1453 = vmul.f32 %v1441, 1.442695
    %v1454 = vpow.pop %v1453
    %v1455 = vmul.f32 %v1442, 1.442695
    %v1456 = vpow.pop %v1455
    %v1457 = vmul.f32 %v1443, 1.442695
    %v1458 = vpow.pop %v1457
    %v1459 = vmul.f32 %v1444, 1.442695
    %v1460 = vpow.pop %v1459
    %v1461 = vadd.f32 %v1446, 1.0
    %v1462 = vadd.f32 %v1448, 1.0
    %v1463 = vadd.f32 %v1450, 1.0
    %v1464 = vadd.f32 %v1452, 1.0
    %v1465 = vadd.f32 %v1454, 1.0
    %v1466 = vadd.f32 %v1456, 1.0
    %v1467 = vadd.f32 %v1458, 1.0
    %v1468 = vadd.f32 %v1460, 1.0
    %v1469 = vrcp.pop %v1461
    %v1470 = vmul.f32 1.0, %v1469
    %v1471 = vrcp.pop %v1462
    %v1472 = vmul.f32 1.0, %v1471
    %v1473 = vrcp.pop %v1463
    %v1474 = vmul.f32 1.0, %v1473
    %v1475 = vrcp.pop %v1464
    %v1476 = vmul.f32 1.0, %v1475
    %v1477 = vrcp.pop %v1465
    %v1478 = vmul.f32 1.0, %v1477
    %v1479 = vrcp.pop %v1466
    %v1480 = vmul.f32 1.0, %v1479
    %v1481 = vrcp.pop %v1467
    %v1482 = vmul.f32 1.0, %v1481
    %v1483 = vrcp.pop %v1468
    %v1484 = vmul.f32 1.0, %v1483
    %v1485 = vmul.f32 %v1334, %v1470
    %v1486 = vmul.f32 %v1338, %v1472
    %v1487 = vmul.f32 %v1344, %v1474
    %v1488 = vmul.f32 %v1348, %v1476
    %v1489 = vmul.f32 %v1354, %v1478
    %v1490 = vmul.f32 %v1358, %v1480
    %v1491 = vmul.f32 %v1364, %v1482
    %v1492 = vmul.f32 %v1368, %v1484
    %v1493 = vadd.f32 %v1485, %v1407
    %v1494 = vadd.f32 %v1486, %v1410
    %v1495 = vadd.f32 %v1487, %v1415
    %v1496 = vadd.f32 %v1488, %v1418
    %v1497 = vadd.f32 %v1489, %v1423
    %v1498 = vadd.f32 %v1490, %v1426
    %v1499 = vadd.f32 %v1491, %v1431
    %v1500 = vadd.f32 %v1492, %v1434
    %v1501 = vmax.f32 %v1493, 0.0
    %v1502 = vmax.f32 %v1494, 0.0
    %v1503 = vmax.f32 %v1495, 0.0
    %v1504 = vmax.f32 %v1496, 0.0
    %v1505 = vmax.f32 %v1497, 0.0
    %v1506 = vmax.f32 %v1498, 0.0
    %v1507 = vmax.f32 %v1499, 0.0
    %v1508 = vmax.f32 %v1500, 0.0
    %v1509 = vld [vmem:[%s9 + $0x2] sm:$0x1]
    %v1510 = vld [vmem:[%s10 + $0x2] sm:$0x1]
    %v1511 = vadd.f32 %v1501, %v1502
    %v1512 = vadd.f32 %v1511, %v1503
    %v1513 = vadd.f32 %v1512, %v1504
    %v1514 = vadd.f32 %v1513, %v1505
    %v1515 = vadd.f32 %v1514, %v1506
    %v1516 = vadd.f32 %v1515, %v1507
    %v1517 = vadd.f32 %v1516, %v1508
    %v1518 = vrot.slane %v1517, 4
    %v1519 = vadd.f32 %v1517, %v1518
    %v1520 = vrot.slane %v1519, 2
    %v1521 = vadd.f32 %v1519, %v1520
    %v1522 = vrot.slane %v1521, 1
    %v1523 = vadd.f32 %v1521, %v1522
    %1524 = vmatprep.subr.mxu0 0.0
    %1525 = vmatpush1.msra.mxu0 %v559
    %1526 = vmatprep.subr.mxu0 0.0
    %1527 = vmatpush1.msra.mxu0 %v560
    %1528 = vmatprep.subr.mxu0 0.0
    %1529 = vmatpush1.msra.mxu0 %v561
    %1530 = vmatprep.subr.mxu0 0.0
    %1531 = vmatpush1.msra.mxu0 %v562
    %1532 = vmatprep.subr.mxu0 0.0
    %1533 = vmatpush1.msra.mxu0 %v563
    %1534 = vmatprep.subr.mxu0 0.0
    %1535 = vmatpush1.msra.mxu0 %v564
    %1536 = vmatprep.subr.mxu0 0.0
    %1537 = vmatpush1.msra.mxu0 %v565
    %1538 = vmatprep.subr.mxu0 0.0
    %1539 = vmatpush1.msra.mxu0 %v566
    %1540 = vmatprep.subr.mxu0 0.0
    %1541 = vmatpush1.msra.mxu0 %v567
    %1542 = vmatprep.subr.mxu0 0.0
    %1543 = vmatpush1.msra.mxu0 %v568
    %1544 = vmatprep.subr.mxu0 0.0
    %1545 = vmatpush1.msra.mxu0 %v569
    %1546 = vmatprep.subr.mxu0 0.0
    %1547 = vmatpush1.msra.mxu0 %v570
    %1548 = vmatprep.subr.mxu0 0.0
    %1549 = vmatpush1.msra.mxu0 %v571
    %1550 = vmatprep.subr.mxu0 0.0
    %1551 = vmatpush1.msra.mxu0 %v572
    %1552 = vmatprep.subr.mxu0 0.0
    %1553 = vmatpush1.msra.mxu0 %v573
    %1554 = vmatprep.subr.mxu0 0.0
    %1555 = vmatpush1.msra.mxu0 %v574
    %1556 = vmatprep.subr.mxu0 0.0
    %1557 = vmatpush1.msra.mxu0 0.0
    %1558 = vmatprep.subr.mxu0 0.0
    %1559 = vmatpush1.msra.mxu0 0.0
    %1560 = vmatprep.subr.mxu0 0.0
    %1561 = vmatpush1.msra.mxu0 0.0
    %1562 = vmatprep.subr.mxu0 0.0
    %1563 = vmatpush1.msra.mxu0 0.0
    %1564 = vmatprep.subr.mxu0 0.0
    %1565 = vmatpush1.msra.mxu0 0.0
    %1566 = vmatprep.subr.mxu0 0.0
    %1567 = vmatpush1.msra.mxu0 0.0
    %1568 = vmatprep.subr.mxu0 0.0
    %1569 = vmatpush1.msra.mxu0 0.0
    %1570 = vmatprep.subr.mxu0 0.0
    %1571 = vmatpush1.msra.mxu0 0.0
    %1572 = vmatprep.subr.mxu0 0.0
    %1573 = vmatpush1.msra.mxu0 0.0
    %1574 = vmatprep.subr.mxu0 0.0
    %1575 = vmatpush1.msra.mxu0 0.0
    %1576 = vmatprep.subr.mxu0 0.0
    %1577 = vmatpush1.msra.mxu0 0.0
    %1578 = vmatprep.subr.mxu0 0.0
    %1579 = vmatpush1.msra.mxu0 0.0
    %1580 = vmatprep.subr.mxu0 0.0
    %1581 = vmatpush1.msra.mxu0 0.0
    %1582 = vmatprep.subr.mxu0 0.0
    %1583 = vmatpush1.msra.mxu0 0.0
    %1584 = vmatprep.subr.mxu0 0.0
    %1585 = vmatpush1.msra.mxu0 0.0
    %1586 = vmatprep.subr.mxu0 0.0
    %1587 = vmatpush1.msra.mxu0 0.0
    %1588 = vmatprep.mubr.f32.mxu0 0.0
    %1589 = vmatmul.mubr.f32.gmra.mrb[0].mxu0 %v1523
    %v1590 = vpop.f32.mrb[0].mxu0
    %v1591 = vadd.f32 0.0, %v1590
    %v1592 = vpop.f32.mrb[0].mxu0
    %1593 = vdwg.mxu0
    %v1594 = vmul.f32 %v1591, 0.001953125
    %v1595 = vlaneseq
    %v1596 = vshrl.u32 %v1595, 7
    %v1597 = vsub.s32 0, %v1596
    %v1598 = vrot.slane %v1594, %v1597
    %v1599 = vsub.f32 %v1501, %v1598
    %v1600 = vsub.f32 %v1502, %v1598
    %v1601 = vsub.f32 %v1503, %v1598
    %v1602 = vsub.f32 %v1504, %v1598
    %v1603 = vsub.f32 %v1505, %v1598
    %v1604 = vsub.f32 %v1506, %v1598
    %v1605 = vsub.f32 %v1507, %v1598
    %v1606 = vsub.f32 %v1508, %v1598
    %v1607 = vmul.f32 %v1599, %v1599
    %v1608 = vmul.f32 %v1600, %v1600
    %v1609 = vmul.f32 %v1601, %v1601
    %v1610 = vmul.f32 %v1602, %v1602
    %v1611 = vmul.f32 %v1603, %v1603
    %v1612 = vmul.f32 %v1604, %v1604
    %v1613 = vmul.f32 %v1605, %v1605
    %v1614 = vmul.f32 %v1606, %v1606
    %v1615 = vadd.f32 %v1607, %v1608
    %v1616 = vadd.f32 %v1615, %v1609
    %v1617 = vadd.f32 %v1616, %v1610
    %v1618 = vadd.f32 %v1617, %v1611
    %v1619 = vadd.f32 %v1618, %v1612
    %v1620 = vadd.f32 %v1619, %v1613
    %v1621 = vadd.f32 %v1620, %v1614
    %v1622 = vrot.slane %v1621, 4
    %v1623 = vadd.f32 %v1621, %v1622
    %v1624 = vrot.slane %v1623, 2
    %v1625 = vadd.f32 %v1623, %v1624
    %v1626 = vrot.slane %v1625, 1
    %v1627 = vadd.f32 %v1625, %v1626
    %1628 = vmatprep.subr.mxu0 0.0
    %1629 = vmatpush1.msra.mxu0 %v559
    %1630 = vmatprep.subr.mxu0 0.0
    %1631 = vmatpush1.msra.mxu0 %v560
    %1632 = vmatprep.subr.mxu0 0.0
    %1633 = vmatpush1.msra.mxu0 %v561
    %1634 = vmatprep.subr.mxu0 0.0
    %1635 = vmatpush1.msra.mxu0 %v562
    %1636 = vmatprep.subr.mxu0 0.0
    %1637 = vmatpush1.msra.mxu0 %v563
    %1638 = vmatprep.subr.mxu0 0.0
    %1639 = vmatpush1.msra.mxu0 %v564
    %1640 = vmatprep.subr.mxu0 0.0
    %1641 = vmatpush1.msra.mxu0 %v565
    %1642 = vmatprep.subr.mxu0 0.0
    %1643 = vmatpush1.msra.mxu0 %v566
    %1644 = vmatprep.subr.mxu0 0.0
    %1645 = vmatpush1.msra.mxu0 %v567
    %1646 = vmatprep.subr.mxu0 0.0
    %1647 = vmatpush1.msra.mxu0 %v568
    %1648 = vmatprep.subr.mxu0 0.0
    %1649 = vmatpush1.msra.mxu0 %v569
    %1650 = vmatprep.subr.mxu0 0.0
    %1651 = vmatpush1.msra.mxu0 %v570
    %1652 = vmatprep.subr.mxu0 0.0
    %1653 = vmatpush1.msra.mxu0 %v571
    %1654 = vmatprep.subr.mxu0 0.0
    %1655 = vmatpush1.msra.mxu0 %v572
    %1656 = vmatprep.subr.mxu0 0.0
    %1657 = vmatpush1.msra.mxu0 %v573
    %1658 = vmatprep.subr.mxu0 0.0
    %1659 = vmatpush1.msra.mxu0 %v574
    %1660 = vmatprep.subr.mxu0 0.0
    %1661 = vmatpush1.msra.mxu0 0.0
    %1662 = vmatprep.subr.mxu0 0.0
    %1663 = vmatpush1.msra.mxu0 0.0
    %1664 = vmatprep.subr.mxu0 0.0
    %1665 = vmatpush1.msra.mxu0 0.0
    %1666 = vmatprep.subr.mxu0 0.0
    %1667 = vmatpush1.msra.mxu0 0.0
    %1668 = vmatprep.subr.mxu0 0.0
    %1669 = vmatpush1.msra.mxu0 0.0
    %1670 = vmatprep.subr.mxu0 0.0
    %1671 = vmatpush1.msra.mxu0 0.0
    %1672 = vmatprep.subr.mxu0 0.0
    %1673 = vmatpush1.msra.mxu0 0.0
    %1674 = vmatprep.subr.mxu0 0.0
    %1675 = vmatpush1.msra.mxu0 0.0
    %1676 = vmatprep.subr.mxu0 0.0
    %1677 = vmatpush1.msra.mxu0 0.0
    %1678 = vmatprep.subr.mxu0 0.0
    %1679 = vmatpush1.msra.mxu0 0.0
    %1680 = vmatprep.subr.mxu0 0.0
    %1681 = vmatpush1.msra.mxu0 0.0
    %1682 = vmatprep.subr.mxu0 0.0
    %1683 = vmatpush1.msra.mxu0 0.0
    %1684 = vmatprep.subr.mxu0 0.0
    %1685 = vmatpush1.msra.mxu0 0.0
    %1686 = vmatprep.subr.mxu0 0.0
    %1687 = vmatpush1.msra.mxu0 0.0
    %1688 = vmatprep.subr.mxu0 0.0
    %1689 = vmatpush1.msra.mxu0 0.0
    %1690 = vmatprep.subr.mxu0 0.0
    %1691 = vmatpush1.msra.mxu0 0.0
    %1692 = vmatprep.mubr.f32.mxu0 0.0
    %1693 = vmatmul.mubr.f32.gmra.mrb[0].mxu0 %v1627
    %v1694 = vpop.f32.mrb[0].mxu0
    %v1695 = vadd.f32 0.0, %v1694
    %v1696 = vpop.f32.mrb[0].mxu0
    %1697 = vdwg.mxu0
    %v1698 = vmul.f32 %v1695, 0.001953125
    %v1699 = vadd.f32 %v1698, 1e-05
    %v1700 = vrsqrt.pop %v1699
    %v1701 = vlaneseq
    %v1702 = vshrl.u32 %v1701, 7
    %v1703 = vsub.s32 0, %v1702
    %v1704 = vrot.slane %v1700, %v1703
    %v1705 = vmul.f32 %v1599, %v1704
    %v1706 = vmul.f32 %v1600, %v1704
    %v1707 = vmul.f32 %v1601, %v1704
    %v1708 = vmul.f32 %v1602, %v1704
    %v1709 = vmul.f32 %v1603, %v1704
    %v1710 = vmul.f32 %v1604, %v1704
    %v1711 = vmul.f32 %v1605, %v1704
    %v1712 = vmul.f32 %v1606, %v1704
    %v1713 = vlaneseq
    %v1714 = vshrl.u32 %v1713, 7
    %v1715 = vsub.s32 0, %v1714
    %v1716 = vrot.slane %v1509, %v1715
    %v1717 = vmul.f32 %v1705, %v1716
    %v1718 = vmul.f32 %v1706, %v1716
    %v1719 = vmul.f32 %v1707, %v1716
    %v1720 = vmul.f32 %v1708, %v1716
    %v1721 = vmul.f32 %v1709, %v1716
    %v1722 = vmul.f32 %v1710, %v1716
    %v1723 = vmul.f32 %v1711, %v1716
    %v1724 = vmul.f32 %v1712, %v1716
    %v1725 = vlaneseq
    %v1726 = vshrl.u32 %v1725, 7
    %v1727 = vsub.s32 0, %v1726
    %v1728 = vrot.slane %v1510, %v1727
    %v1729 = vadd.f32 %v1717, %v1728
    %v1730 = vadd.f32 %v1718, %v1728
    %v1731 = vadd.f32 %v1719, %v1728
    %v1732 = vadd.f32 %v1720, %v1728
    %v1733 = vadd.f32 %v1721, %v1728
    %v1734 = vadd.f32 %v1722, %v1728
    %v1735 = vadd.f32 %v1723, %v1728
    %v1736 = vadd.f32 %v1724, %v1728
    %v1737 = vadd.f32 %v1729, %v361
    %v1738 = vadd.f32 %v1730, %v365
    %v1739 = vadd.f32 %v1731, %v371
    %v1740 = vadd.f32 %v1732, %v375
    %v1741 = vadd.f32 %v1733, %v381
    %v1742 = vadd.f32 %v1734, %v385
    %v1743 = vadd.f32 %v1735, %v391
    %v1744 = vadd.f32 %v1736, %v395
    %v1745 = vmax.f32 %v1737, 0.0
    %v1746 = vmax.f32 %v1738, 0.0
    %v1747 = vmax.f32 %v1739, 0.0
    %v1748 = vmax.f32 %v1740, 0.0
    %v1749 = vmax.f32 %v1741, 0.0
    %v1750 = vmax.f32 %v1742, 0.0
    %v1751 = vmax.f32 %v1743, 0.0
    %v1752 = vmax.f32 %v1744, 0.0
    %1753 = vst [vmem:[%s11] sm:$0xff] %v1745
    %1754 = vst [vmem:[%s11 + $0x8] sm:$0xff] %v1746
    %1755 = vst [vmem:[%s11 + $0x10] sm:$0xff] %v1747
    %1756 = vst [vmem:[%s11 + $0x18] sm:$0xff] %v1748
    %1757 = vst [vmem:[%s11 + $0x20] sm:$0xff] %v1749
    %1758 = vst [vmem:[%s11 + $0x28] sm:$0xff] %v1750
    %1759 = vst [vmem:[%s11 + $0x30] sm:$0xff] %v1751
    %1760 = vst [vmem:[%s11 + $0x38] sm:$0xff] %v1752
    // Predicated region
    $region58: #{sandwich_layer_gcn_forward.1} parent=1 // pred_check
      _
    $region59: #{sandwich_layer_gcn_forward.1} parent=1 // pred_check_branch
      %1762 = sbr.rel (0) target = $region61
    $region60: #{sandwich_layer_gcn_forward.1} parent=1 // pred_region
      _
    $region61: #{sandwich_layer_gcn_forward.1} parent=1 // pred_fallthru
      _
    // Predicated region
    $region62: #{sandwich_layer_gcn_forward.1} parent=1 // pred_check
      _
    $region63: #{sandwich_layer_gcn_forward.1} parent=1 // pred_check_branch
      %1764 = sbr.rel (0) target = $region65
    $region64: #{sandwich_layer_gcn_forward.1} parent=1 // pred_region
      _
    $region65: #{sandwich_layer_gcn_forward.1} parent=1 // pred_fallthru
      _
    %1765 = vsyncpa [#allocation3], 1
    %1766 = vsyncpa [#allocation5], 1

</llo_original>
